<compile_context>
chip_gen: v7x
topology: tpu7x:2x2x1
jax: 0.10.0
libtpu: 0.0.40
codegen_flags: <defaults>
</compile_context>

<pallas_src>
import functools

import jax
import jax.numpy as jnp
from jax.experimental import pallas as pl
from jax.experimental.pallas import tpu as pltpu


def _default_tile_n():
    """Lane-dense linear output tile: 256 on v6e/v7x, 128 on v5*/unknown."""
    try:
        kind = jax.devices()[0].device_kind.lower()
    except Exception:
        return 128
    if "v6" in kind or "v7" in kind:
        return 256
    return 128          # v5e/v5p/v4/unknown: 128-wide MXU or conservative


def _pick_div(n, pref):
    """Largest tile <= pref that divides n, preferring multiples of 128."""
    pref = max(1, min(pref, n))
    if n % pref == 0:
        return pref
    for c in range(pref // 128, 0, -1):
        if n % (c * 128) == 0:
            return c * 128
    return n


# --------------------------------------------------------------------------
# Fused Conv2d(3x3, pad=1) + bias (+ ReLU) (+ 2x2/2 MaxPool) with optional
# fused per-channel quantization (apply on input / stats on output).
# Grid over batch.  NOTE: at real VGG sizes on v7x (64 MiB VMEM) the grid
# would additionally need an H-row tile axis (1-row halo); demo images fit.
# --------------------------------------------------------------------------
def _conv3x3_block_kernel(*refs, relu, pool, quant_levels, stats):
    nin = 5 if quant_levels is not None else 3
    x_ref, w_ref, b_ref = refs[0], refs[1], refs[2]
    if quant_levels is not None:
        qmn_ref, qmx_ref = refs[3], refs[4]
    o_ref = refs[nin]
    k = nin + 1
    if stats:
        smn_ref, smx_ref = refs[k], refs[k + 1]
        k += 2
    xpad_ref = refs[k]
    yh_ref = refs[k + 1] if pool else None

    _, H, W, Cin = x_ref.shape
    Cout = o_ref.shape[-1]
    sdt = xpad_ref.dtype

    x = x_ref[0]                                    # (H, W, Cin) f32

    # Fused quantization-apply on the input (per channel, with zd==0 guard).
    if quant_levels is not None:
        xf = x.reshape(H * W, Cin)
        mn = qmn_ref[...]
        mx = qmx_ref[...]
        zd = jnp.where(mx - mn == 0.0, 1.0, mx - mn)
        xf = mn + jnp.round((xf - mn) * (quant_levels / zd)) * (zd / quant_levels)
        x = xf.reshape(H, W, Cin)

    # Zero only the 1-pixel border (rows 0/H+1, column bands) every step; the
    # interior is fully overwritten below.  Cheap and megacore-safe.
    zband = jnp.zeros((H + 2, 8, Cin), sdt)
    xpad_ref[:, 0:8, :] = zband
    xpad_ref[:, W + 8:W + 16, :] = zband
    zrow = jnp.zeros((1, W, Cin), sdt)
    xpad_ref[0:1, 8:8 + W, :] = zrow
    xpad_ref[H + 1:H + 2, 8:8 + W, :] = zrow
    xpad_ref[1:H + 1, 8:8 + W, :] = x.astype(sdt)

    # 3 accumulating K=3*Cin MXU dots: one materialized W-shifted window per
    # dx (read straight from VMEM), free leading-dim slices for the dy taps.
    y = b_ref[...]                                  # (1, Cout) f32, broadcasts
    for dx in range(3):
        x_dx = xpad_ref[:, 7 + dx:7 + dx + W, :]    # (H+2, W, Cin)
        xi = jnp.concatenate([x_dx[dy:dy + H] for dy in range(3)], axis=-1)
        xi = xi.reshape(H * W, 3 * Cin).astype(jnp.bfloat16)
        y = y + jnp.dot(xi, w_ref[dx], preferred_element_type=jnp.float32)

    if relu:
        y = jnp.maximum(y, 0.0)                     # fused ReLU

    if pool:
        Ho, Wo = H // 2, W // 2
        # H direction on the in-register value (free reshape), W direction via
        # strided sublane reads of a small staged buffer.
        yh_ref[...] = jnp.max(y.reshape(Ho, 2, W, Cout), axis=1)
        o_val = jnp.maximum(yh_ref[:, pl.ds(0, Wo, 2), :],
                            yh_ref[:, pl.ds(1, Wo, 2), :])
    else:
        o_val = y.reshape(H, W, Cout)
    o_ref[...] = o_val.reshape(o_ref.shape)

    # Fused per-channel min/max stats of this block's output (resident (1,C)
    # accumulator outputs across the sequential batch axis).
    if stats:
        of = o_val.reshape(-1, Cout)
        mn_o = jnp.min(of, axis=0, keepdims=True)
        mx_o = jnp.max(of, axis=0, keepdims=True)
        n = pl.program_id(0)

        @pl.when(n == 0)
        def _():
            smn_ref[...] = mn_o
            smx_ref[...] = mx_o

        @pl.when(n > 0)
        def _():
            smn_ref[...] = jnp.minimum(smn_ref[...], mn_o)
            smx_ref[...] = jnp.maximum(smx_ref[...], mx_o)


def conv3x3_block(x, w, b, relu=True, pool=True, quant=None, stats=False):
    # x: (N, H, W, Cin) f32 NHWC; w: (3, 3*Cin, Cout) bf16; b: (Cout,) f32
    # quant: optional (mn, mx, levels) -> dequantize input per channel
    # stats: also return per-channel (min, max) of the block output
    N, H, W, Cin = x.shape
    Cout = w.shape[-1]
    Ho, Wo = (H // 2, W // 2) if pool else (H, W)

    in_specs = [pl.BlockSpec((1, H, W, Cin), lambda n: (n, 0, 0, 0)),
                pl.BlockSpec((3, 3 * Cin, Cout), lambda n: (0, 0, 0)),
                pl.BlockSpec((1, Cout), lambda n: (0, 0))]
    inputs = [x, w, b.reshape(1, Cout)]
    levels = None
    if quant is not None:
        mn, mx, levels = quant
        in_specs += [pl.BlockSpec((1, Cin), lambda n: (0, 0)),
                     pl.BlockSpec((1, Cin), lambda n: (0, 0))]
        inputs += [mn, mx]
        levels = float(levels)

    out_shape = [jax.ShapeDtypeStruct((N, Ho, Wo, Cout), jnp.float32)]
    out_specs = [pl.BlockSpec((1, Ho, Wo, Cout), lambda n: (n, 0, 0, 0))]
    if stats:
        out_shape += [jax.ShapeDtypeStruct((1, Cout), jnp.float32)] * 2
        out_specs += [pl.BlockSpec((1, Cout), lambda n: (0, 0)),
                      pl.BlockSpec((1, Cout), lambda n: (0, 0))]

    scratch = [pltpu.VMEM((H + 2, W + 16, Cin), jnp.float32)]
    if pool:
        scratch.append(pltpu.VMEM((Ho, W, Cout), jnp.float32))

    # A resident stats accumulator requires a sequential (arbitrary) batch axis.
    sem = ("arbitrary",) if stats else ("parallel",)

    return pl.pallas_call(
        functools.partial(_conv3x3_block_kernel, relu=relu, pool=pool,
                          quant_levels=levels, stats=stats),
        grid=(N,),
        in_specs=in_specs,
        out_specs=tuple(out_specs) if stats else out_specs[0],
        out_shape=tuple(out_shape) if stats else out_shape[0],
        scratch_shapes=scratch,
        compiler_params=pltpu.CompilerParams(dimension_semantics=sem),
    )(*inputs)


# --------------------------------------------------------------------------
# Standalone ReLU / MaxPool / quantization fallbacks: only used when
# `partition_id` cuts between Conv|ReLU or ReLU|MaxPool (so they cannot be
# fused across the quantization boundary).  Not on the demo hot path.
# --------------------------------------------------------------------------
def _relu_kernel(x_ref, o_ref):
    o_ref[...] = jnp.maximum(x_ref[...], 0.0)


def relu_op(x):
    N = x.shape[0]
    blk = (1,) + x.shape[1:]
    idx = lambda n: (n,) + (0,) * (x.ndim - 1)
    return pl.pallas_call(
        _relu_kernel,
        grid=(N,),
        in_specs=[pl.BlockSpec(blk, idx)],
        out_specs=pl.BlockSpec(blk, idx),
        out_shape=jax.ShapeDtypeStruct(x.shape, x.dtype),
        compiler_params=pltpu.CompilerParams(
            dimension_semantics=("parallel",)),
    )(x)


def _maxpool_kernel(x_ref, o_ref, yh_ref):
    _, H, W, C = x_ref.shape
    Wo = W // 2
    yh_ref[...] = jnp.max(x_ref[0].reshape(H // 2, 2, W, C), axis=1)
    o_val = jnp.maximum(yh_ref[:, pl.ds(0, Wo, 2), :],
                        yh_ref[:, pl.ds(1, Wo, 2), :])
    o_ref[...] = o_val.reshape(o_ref.shape)


def maxpool2x2(x):
    N, H, W, C = x.shape
    return pl.pallas_call(
        _maxpool_kernel,
        grid=(N,),
        in_specs=[pl.BlockSpec((1, H, W, C), lambda n: (n, 0, 0, 0))],
        out_specs=pl.BlockSpec((1, H // 2, W // 2, C), lambda n: (n, 0, 0, 0)),
        out_shape=jax.ShapeDtypeStruct((N, H // 2, W // 2, C), jnp.float32),
        scratch_shapes=[pltpu.VMEM((H // 2, W, C), jnp.float32)],
        compiler_params=pltpu.CompilerParams(
            dimension_semantics=("parallel",)),
    )(x)


def _stats_kernel(x_ref, mn_ref, mx_ref):
    n = pl.program_id(0)
    C = x_ref.shape[-1]
    xf = x_ref[...].reshape(-1, C)
    mn = jnp.min(xf, axis=0, keepdims=True)
    mx = jnp.max(xf, axis=0, keepdims=True)

    @pl.when(n == 0)
    def _():
        mn_ref[...] = mn
        mx_ref[...] = mx

    @pl.when(n > 0)
    def _():
        mn_ref[...] = jnp.minimum(mn_ref[...], mn)
        mx_ref[...] = jnp.maximum(mx_ref[...], mx)


def channel_stats(x):
    N, C = x.shape[0], x.shape[-1]
    blk = (1,) + x.shape[1:]
    idx = lambda n: (n,) + (0,) * (x.ndim - 1)
    return pl.pallas_call(
        _stats_kernel,
        grid=(N,),
        in_specs=[pl.BlockSpec(blk, idx)],
        out_specs=(pl.BlockSpec((1, C), lambda n: (0, 0)),
                   pl.BlockSpec((1, C), lambda n: (0, 0))),
        out_shape=(jax.ShapeDtypeStruct((1, C), jnp.float32),
                   jax.ShapeDtypeStruct((1, C), jnp.float32)),
        compiler_params=pltpu.CompilerParams(
            dimension_semantics=("arbitrary",)),
    )(x)


def _quant_apply_kernel(x_ref, mn_ref, mx_ref, o_ref, *, levels):
    C = x_ref.shape[-1]
    xf = x_ref[...].reshape(-1, C)
    mn = mn_ref[...]
    mx = mx_ref[...]
    zd = jnp.where(mx - mn == 0.0, 1.0, mx - mn)
    q = mn + jnp.round((xf - mn) * (levels / zd)) * (zd / levels)
    o_ref[...] = q.reshape(o_ref.shape)


def channel_quant_apply(x, mn, mx, levels):
    N, C = x.shape[0], x.shape[-1]
    blk = (1,) + x.shape[1:]
    idx = lambda n: (n,) + (0,) * (x.ndim - 1)
    return pl.pallas_call(
        functools.partial(_quant_apply_kernel, levels=float(levels)),
        grid=(N,),
        in_specs=[pl.BlockSpec(blk, idx),
                  pl.BlockSpec((1, C), lambda n: (0, 0)),
                  pl.BlockSpec((1, C), lambda n: (0, 0))],
        out_specs=pl.BlockSpec(blk, idx),
        out_shape=jax.ShapeDtypeStruct(x.shape, x.dtype),
        compiler_params=pltpu.CompilerParams(
            dimension_semantics=("parallel",)),
    )(x, mn, mx)


# --------------------------------------------------------------------------
# Linear (+ fused bias / ReLU).  bf16 activations & weights, f32 accumulate.
# Single-shot kernel (no K axis / accumulator) when K fits in one tile;
# otherwise tiled K with a resident f32 VMEM accumulator.
# --------------------------------------------------------------------------
def _linear_kernel_single(x_ref, w_ref, b_ref, o_ref, *, relu):
    y = jnp.dot(x_ref[...], w_ref[...], preferred_element_type=jnp.float32)
    y = y + b_ref[...]
    if relu:
        y = jnp.maximum(y, 0.0)
    o_ref[...] = y.astype(o_ref.dtype)


def _linear_kernel_tiled(x_ref, w_ref, b_ref, o_ref, acc_ref, *, relu):
    k = pl.program_id(1)

    @pl.when(k == 0)
    def _():
        acc_ref[...] = jnp.zeros_like(acc_ref)

    acc_ref[...] += jnp.dot(x_ref[...], w_ref[...],
                            preferred_element_type=jnp.float32)

    @pl.when(k == pl.num_programs(1) - 1)
    def _():
        y = acc_ref[...] + b_ref[...]
        if relu:
            y = jnp.maximum(y, 0.0)
        o_ref[...] = y.astype(o_ref.dtype)


def linear(x, w, b, relu=False, out_dtype=jnp.float32, tile_n=None,
           tile_k=2048):
    # x: (B, K); w: (K, N) bf16; b: (N,) f32
    B, K = x.shape
    N = w.shape[1]
    if x.dtype != jnp.bfloat16:                     # cast once, outside kernel
        x = x.astype(jnp.bfloat16)
    tn = _pick_div(N, tile_n if tile_n is not None else _default_tile_n())
    tk = _pick_div(K, min(tile_k, K))
    b2 = b.reshape(1, N)

    if tk == K:
        return pl.pallas_call(
            functools.partial(_linear_kernel_single, relu=relu),
            grid=(N // tn,),
            in_specs=[pl.BlockSpec((B, K), lambda j: (0, 0)),
                      pl.BlockSpec((K, tn), lambda j: (0, j)),
                      pl.BlockSpec((1, tn), lambda j: (0, j))],
            out_specs=pl.BlockSpec((B, tn), lambda j: (0, j)),
            out_shape=jax.ShapeDtypeStruct((B, N), out_dtype),
            compiler_params=pltpu.CompilerParams(
                dimension_semantics=("parallel",)),
        )(x, w, b2)

    return pl.pallas_call(
        functools.partial(_linear_kernel_tiled, relu=relu),
        grid=(N // tn, K // tk),
        in_specs=[pl.BlockSpec((B, tk), lambda j, k: (0, k)),
                  pl.BlockSpec((tk, tn), lambda j, k: (k, j)),
                  pl.BlockSpec((1, tn), lambda j, k: (0, j))],
        out_specs=pl.BlockSpec((B, tn), lambda j, k: (0, j)),
        out_shape=jax.ShapeDtypeStruct((B, N), out_dtype),
        scratch_shapes=[pltpu.VMEM((B, tn), jnp.float32)],
        compiler_params=pltpu.CompilerParams(
            dimension_semantics=("parallel", "arbitrary")),
    )(x, w, b2)


# --------------------------------------------------------------------------
# The VGG model (scaled-down, deterministic synthetic parameters)
# --------------------------------------------------------------------------
def _fuse_blocks(ops):
    """Group Conv[+ReLU][+MaxPool] runs into single fused blocks."""
    blocks = []
    i = 0
    while i < len(ops):
        kind, idx = ops[i]
        if kind == "conv":
            j = i + 1
            fuse_relu = j < len(ops) and ops[j][0] == "relu"
            if fuse_relu:
                j += 1
            fuse_pool = j < len(ops) and ops[j][0] == "pool"
            if fuse_pool:
                j += 1
            blocks.append(("conv", idx, fuse_relu, fuse_pool))
            i = j
        else:
            blocks.append((kind, idx, False, False))
            i += 1
    return blocks


class PallasVGG:
    def __init__(self, key, partition_id=0, quantization=32, num_class=196,
                 in_ch=3, spatial=16, ch0=64, ch1=128, hidden=512):
        self.partition_id = partition_id
        # NOTE: the PyTorch default quantization=32 gives levels = 2^32-1,
        # which exceeds f32 mantissa precision (the scale/round is numerically
        # meaningless at that setting).  The demo uses quantization=8 (exact).
        self.levels = float(int(pow(2, quantization)) - 1)
        self.num_class = num_class

        # pad conv0's input channels up to a multiple of 8 (zero data + zero
        # weight rows) for sane sublane/lane packing in the first layer.
        self.in_ch = in_ch
        self.in_ch_pad = ((in_ch + 7) // 8) * 8

        ks = jax.random.split(key, 5)

        def conv_init(k, cin, cin_pad, cout):
            kw, kb = jax.random.split(k)
            fan_in = 9 * cin
            w = jax.random.normal(kw, (3, 3, cin, cout), jnp.float32) * (fan_in ** -0.5)
            if cin_pad > cin:
                w = jnp.pad(w, ((0, 0), (0, 0), (0, cin_pad - cin), (0, 0)))
            # (dy, dx, cin, cout) -> (dx, dy*cin, cout): per-dx K=3*Cin im2col
            # slices, bf16 (native MXU input dtype).
            w = w.transpose(1, 0, 2, 3).reshape(3, 3 * cin_pad, cout)
            b = jax.random.normal(kb, (cout,), jnp.float32) * 0.01
            return w.astype(jnp.bfloat16), b

        self.conv_params = [conv_init(ks[0], in_ch, self.in_ch_pad, ch0),
                            conv_init(ks[1], ch0, ch0, ch1)]

        # features mirrors nn.Sequential(Conv, ReLU, MaxPool, Conv, ReLU,
        # MaxPool) so `partition_id` cuts at the same boundaries as the
        # PyTorch module; adjacent Conv/ReLU/MaxPool are fused whenever the
        # partition boundary does not separate them.
        self.feature_ops = [("conv", 0), ("relu", None), ("pool", None),
                            ("conv", 1), ("relu", None), ("pool", None)]
        # TODO(synk): partition_id==42 branch (classifier sized from
        # z_architecture_list) not replicated in this scaled-down demo.

        hp = spatial // 4
        flat = ch1 * hp * hp          # scaled-down stand-in for 25088
        kw, kb = jax.random.split(ks[2])
        w1 = jax.random.normal(kw, (ch1, hp, hp, hidden), jnp.float32) * (flat ** -0.5)
        # Rows are generated in NCHW-flatten order (torch's output.view(N,-1));
        # permute them once so the NHWC-flattened activation feeds fc1 directly
        # (removes the per-forward flatten transpose).
        self.fc1_w = w1.transpose(1, 2, 0, 3).reshape(flat, hidden).astype(jnp.bfloat16)
        self.fc1_b = jax.random.normal(kb, (hidden,), jnp.float32) * 0.01

        kw, kb = jax.random.split(ks[3])
        self.fc2_w = (jax.random.normal(kw, (hidden, hidden), jnp.float32)
                      * (hidden ** -0.5)).astype(jnp.bfloat16)
        self.fc2_b = jax.random.normal(kb, (hidden,), jnp.float32) * 0.01

        # Pad the 196-class head to a lane-dense 256 columns; slice after.
        n_pad = ((num_class + 127) // 128) * 128
        kw, kb = jax.random.split(ks[4])
        w3 = jax.random.normal(kw, (hidden, num_class), jnp.float32) * (hidden ** -0.5)
        b3 = jax.random.normal(kb, (num_class,), jnp.float32) * 0.01
        self.fc3_w = jnp.pad(w3, ((0, 0), (0, n_pad - num_class))).astype(jnp.bfloat16)
        self.fc3_b = jnp.pad(b3, (0, n_pad - num_class))

    def __call__(self, x_nchw):
        # NCHW (PyTorch) -> NHWC (kernel layout) + channel pad: one-time glue.
        x = jnp.transpose(x_nchw, (0, 2, 3, 1))
        if self.in_ch_pad > self.in_ch:
            x = jnp.pad(x, ((0, 0), (0, 0), (0, 0),
                            (0, self.in_ch_pad - self.in_ch)))

        pre = _fuse_blocks(self.feature_ops[:self.partition_id])
        post = _fuse_blocks(self.feature_ops[self.partition_id:])

        # output = self.features[:partition_id](x)
        # The last conv block of the prefix also emits the per-channel min/max
        # (stats fused -> no extra HBM read of the boundary activation).
        stats = None
        for bi, blk in enumerate(pre):
            kind, idx, frelu, fpool = blk
            if kind == "conv":
                w, b = self.conv_params[idx]
                if bi == len(pre) - 1:
                    x, mn, mx = conv3x3_block(x, w, b, relu=frelu, pool=fpool,
                                              stats=True)
                    stats = (mn, mx)
                else:
                    x = conv3x3_block(x, w, b, relu=frelu, pool=fpool)
            elif kind == "relu":
                x = relu_op(x)
            else:
                x = maxpool2x2(x)
        if stats is None:
            # partition_id==0 or the prefix ends with ReLU/MaxPool.
            stats = channel_stats(x)
        mn, mx = stats

        # Per-channel fake quantization at the partition boundary (the
        # detach/.data trick only affects autograd; forward values are the
        # quantized ones).  The apply pass is fused into the first conv block
        # of the suffix when possible.
        if not (post and post[0][0] == "conv"):
            x = channel_quant_apply(x, mn, mx, self.levels)

        # output = self.features[partition_id:](output)
        for bi, blk in enumerate(post):
            kind, idx, frelu, fpool = blk
            if kind == "conv":
                w, b = self.conv_params[idx]
                q = (mn, mx, self.levels) if bi == 0 else None
                x = conv3x3_block(x, w, b, relu=frelu, pool=fpool, quant=q)
            elif kind == "relu":
                x = relu_op(x)
            else:
                x = maxpool2x2(x)

        # torch does output.view(N, -1) on NCHW; fc1_w's rows were permuted at
        # init so the NHWC flatten feeds it directly (no transpose here).
        # Cast once to bf16; classifier activations stay bf16 between layers.
        n = x.shape[0]
        x = x.reshape(n, -1).astype(jnp.bfloat16)

        # classifier
        x = linear(x, self.fc1_w, self.fc1_b, relu=True, out_dtype=jnp.bfloat16)
        # TODO(synk): nn.Dropout omitted (identity in eval mode; stochastic
        # training-mode dropout not implemented).
        x = linear(x, self.fc2_w, self.fc2_b, relu=True, out_dtype=jnp.bfloat16)
        x = linear(x, self.fc3_w, self.fc3_b, relu=False, out_dtype=jnp.float32)
        return x[:, :self.num_class]


if __name__ == "__main__":
    key = jax.random.PRNGKey(0)
    k_param, k_data = jax.random.split(key)

    model = PallasVGG(k_param, partition_id=3, quantization=8, num_class=196,
                      in_ch=3, spatial=16)

    x = jax.random.normal(k_data, (2, 3, 16, 16), jnp.float32)  # NCHW like torch

    out = model(x)
    out = jax.block_until_ready(out)
    assert out.shape == (2, 196), out.shape
    assert bool(jnp.all(jnp.isfinite(out)))
    print("KERNEL_OK")
</pallas_src>

<mosaic_0001>
module attributes {stable_mosaic.version = 11 : i64} {
  func.func @_conv3x3_block_kernel(%arg0: i32, %arg1: memref<1x16x16x8xf32, #tpu.memory_space<vmem>>, %arg2: memref<3x24x64xbf16, #tpu.memory_space<vmem>>, %arg3: memref<1x64xf32, #tpu.memory_space<vmem>>, %arg4: memref<1x8x8x64xf32, #tpu.memory_space<vmem>>, %arg5: memref<1x64xf32, #tpu.memory_space<vmem>>, %arg6: memref<1x64xf32, #tpu.memory_space<vmem>>, %arg7: memref<18x32x8xf32, #tpu.memory_space<vmem>>, %arg8: memref<8x16x64xf32, #tpu.memory_space<vmem>>) attributes {dimension_semantics = [#tpu.dimension_semantics<arbitrary>], iteration_bounds = array<i64: 2>, scalar_prefetch = 0 : i64, scratch_operands = 2 : i64, tpu.core_type = #tpu.core_type<tc>, window_params = [{transform_indices = @transform_0, window_bounds = array<i64: 1, 16, 16, 8>}, {pipeline_mode = #tpu.pipeline_mode<synchronous>, transform_indices = @transform_1, window_bounds = array<i64: 3, 24, 64>}, {pipeline_mode = #tpu.pipeline_mode<synchronous>, transform_indices = @transform_2, window_bounds = array<i64: 1, 64>}, {transform_indices = @transform_3, window_bounds = array<i64: 1, 8, 8, 64>}, {pipeline_mode = #tpu.pipeline_mode<synchronous>, transform_indices = @transform_4, window_bounds = array<i64: 1, 64>}, {pipeline_mode = #tpu.pipeline_mode<synchronous>, transform_indices = @transform_5, window_bounds = array<i64: 1, 64>}]} {
    %c0 = arith.constant 0 : index
    %c0_0 = arith.constant 0 : index
    %c0_1 = arith.constant 0 : index
    %c0_2 = arith.constant 0 : index
    %0 = vector.load %arg1[%c0, %c0_0, %c0_1, %c0_2] : memref<1x16x16x8xf32, #tpu.memory_space<vmem>>, vector<1x16x16x8xf32>
    %1 = vector.shape_cast %0 : vector<1x16x16x8xf32> to vector<16x16x8xf32>
    %cst = arith.constant 0.000000e+00 : f32
    %2 = vector.broadcast %cst : f32 to vector<18x8x8xf32>
    %c0_3 = arith.constant 0 : index
    %c0_4 = arith.constant 0 : index
    %c0_5 = arith.constant 0 : index
    %3 = vector.load %arg7[%c0_3, %c0_4, %c0_5] : memref<18x32x8xf32, #tpu.memory_space<vmem>>, vector<18x8x8xf32>
    tpu.vector_store %arg7[%c0_3, %c0_4, %c0_5], %2 {strides = array<i32>} : memref<18x32x8xf32, #tpu.memory_space<vmem>>, vector<18x8x8xf32>,
    %c0_6 = arith.constant 0 : index
    %c24 = arith.constant 24 : index
    %c0_7 = arith.constant 0 : index
    %4 = vector.load %arg7[%c0_6, %c24, %c0_7] : memref<18x32x8xf32, #tpu.memory_space<vmem>>, vector<18x8x8xf32>
    tpu.vector_store %arg7[%c0_6, %c24, %c0_7], %2 {strides = array<i32>} : memref<18x32x8xf32, #tpu.memory_space<vmem>>, vector<18x8x8xf32>,
    %cst_8 = arith.constant 0.000000e+00 : f32
    %5 = vector.broadcast %cst_8 : f32 to vector<1x16x8xf32>
    %c0_9 = arith.constant 0 : index
    %c8 = arith.constant 8 : index
    %c0_10 = arith.constant 0 : index
    %6 = vector.load %arg7[%c0_9, %c8, %c0_10] : memref<18x32x8xf32, #tpu.memory_space<vmem>>, vector<1x16x8xf32>
    tpu.vector_store %arg7[%c0_9, %c8, %c0_10], %5 {strides = array<i32>} : memref<18x32x8xf32, #tpu.memory_space<vmem>>, vector<1x16x8xf32>,
    %c17 = arith.constant 17 : index
    %c8_11 = arith.constant 8 : index
    %c0_12 = arith.constant 0 : index
    %7 = vector.load %arg7[%c17, %c8_11, %c0_12] : memref<18x32x8xf32, #tpu.memory_space<vmem>>, vector<1x16x8xf32>
    tpu.vector_store %arg7[%c17, %c8_11, %c0_12], %5 {strides = array<i32>} : memref<18x32x8xf32, #tpu.memory_space<vmem>>, vector<1x16x8xf32>,
    %c1 = arith.constant 1 : index
    %c8_13 = arith.constant 8 : index
    %c0_14 = arith.constant 0 : index
    %8 = vector.load %arg7[%c1, %c8_13, %c0_14] : memref<18x32x8xf32, #tpu.memory_space<vmem>>, vector<16x16x8xf32>
    tpu.vector_store %arg7[%c1, %c8_13, %c0_14], %1 {strides = array<i32>} : memref<18x32x8xf32, #tpu.memory_space<vmem>>, vector<16x16x8xf32>,
    %c0_15 = arith.constant 0 : index
    %c0_16 = arith.constant 0 : index
    %9 = vector.load %arg3[%c0_15, %c0_16] : memref<1x64xf32, #tpu.memory_space<vmem>>, vector<1x64xf32>
    %c0_17 = arith.constant 0 : index
    %c7 = arith.constant 7 : index
    %c0_18 = arith.constant 0 : index
    %10 = vector.load %arg7[%c0_17, %c7, %c0_18] : memref<18x32x8xf32, #tpu.memory_space<vmem>>, vector<18x16x8xf32>
    %11 = vector.extract_strided_slice %10 {offsets = [0, 0, 0], sizes = [16, 16, 8], strides = [1, 1, 1]} : vector<18x16x8xf32> to vector<16x16x8xf32>
    %12 = vector.extract_strided_slice %10 {offsets = [1, 0, 0], sizes = [16, 16, 8], strides = [1, 1, 1]} : vector<18x16x8xf32> to vector<16x16x8xf32>
    %13 = vector.extract_strided_slice %10 {offsets = [2, 0, 0], sizes = [16, 16, 8], strides = [1, 1, 1]} : vector<18x16x8xf32> to vector<16x16x8xf32>
    %14 = tpu.concatenate %11, %12, %13 in 2 : vector<16x16x8xf32>, vector<16x16x8xf32>, vector<16x16x8xf32> -> vector<16x16x24xf32>
    %15 = vector.shape_cast %14 : vector<16x16x24xf32> to vector<256x24xf32>
    %16 = arith.truncf %15 : vector<256x24xf32> to vector<256x24xbf16>
    %c0_19 = arith.constant 0 : index
    %c0_20 = arith.constant 0 : index
    %c0_21 = arith.constant 0 : index
    %17 = vector.load %arg2[%c0_19, %c0_20, %c0_21] : memref<3x24x64xbf16, #tpu.memory_space<vmem>>, vector<1x24x64xbf16>
    %18 = vector.shape_cast %17 : vector<1x24x64xbf16> to vector<24x64xbf16>
    %cst_22 = arith.constant dense<0.000000e+00> : vector<256x64xf32>
    %19 = tpu.matmul %16, %18, %cst_22 {dimension_numbers = #tpu.dot_dimension_numbers<[1], [0], [0], [1], [0, 0, 1, 1], [], []>} : vector<256x24xbf16>, vector<24x64xbf16>, vector<256x64xf32> -> vector<256x64xf32>
    %20 = vector.broadcast %9 : vector<1x64xf32> to vector<256x64xf32>
    %21 = arith.addf %20, %19 : vector<256x64xf32>
    %c0_23 = arith.constant 0 : index
    %c8_24 = arith.constant 8 : index
    %c0_25 = arith.constant 0 : index
    %22 = vector.load %arg7[%c0_23, %c8_24, %c0_25] : memref<18x32x8xf32, #tpu.memory_space<vmem>>, vector<18x16x8xf32>
    %23 = vector.extract_strided_slice %22 {offsets = [0, 0, 0], sizes = [16, 16, 8], strides = [1, 1, 1]} : vector<18x16x8xf32> to vector<16x16x8xf32>
    %24 = vector.extract_strided_slice %22 {offsets = [1, 0, 0], sizes = [16, 16, 8], strides = [1, 1, 1]} : vector<18x16x8xf32> to vector<16x16x8xf32>
    %25 = vector.extract_strided_slice %22 {offsets = [2, 0, 0], sizes = [16, 16, 8], strides = [1, 1, 1]} : vector<18x16x8xf32> to vector<16x16x8xf32>
    %26 = tpu.concatenate %23, %24, %25 in 2 : vector<16x16x8xf32>, vector<16x16x8xf32>, vector<16x16x8xf32> -> vector<16x16x24xf32>
    %27 = vector.shape_cast %26 : vector<16x16x24xf32> to vector<256x24xf32>
    %28 = arith.truncf %27 : vector<256x24xf32> to vector<256x24xbf16>
    %c1_26 = arith.constant 1 : index
    %c0_27 = arith.constant 0 : index
    %c0_28 = arith.constant 0 : index
    %29 = vector.load %arg2[%c1_26, %c0_27, %c0_28] : memref<3x24x64xbf16, #tpu.memory_space<vmem>>, vector<1x24x64xbf16>
    %30 = vector.shape_cast %29 : vector<1x24x64xbf16> to vector<24x64xbf16>
    %cst_29 = arith.constant dense<0.000000e+00> : vector<256x64xf32>
    %31 = tpu.matmul %28, %30, %cst_29 {dimension_numbers = #tpu.dot_dimension_numbers<[1], [0], [0], [1], [0, 0, 1, 1], [], []>} : vector<256x24xbf16>, vector<24x64xbf16>, vector<256x64xf32> -> vector<256x64xf32>
    %32 = arith.addf %21, %31 : vector<256x64xf32>
    %c0_30 = arith.constant 0 : index
    %c9 = arith.constant 9 : index
    %c0_31 = arith.constant 0 : index
    %33 = vector.load %arg7[%c0_30, %c9, %c0_31] : memref<18x32x8xf32, #tpu.memory_space<vmem>>, vector<18x16x8xf32>
    %34 = vector.extract_strided_slice %33 {offsets = [0, 0, 0], sizes = [16, 16, 8], strides = [1, 1, 1]} : vector<18x16x8xf32> to vector<16x16x8xf32>
    %35 = vector.extract_strided_slice %33 {offsets = [1, 0, 0], sizes = [16, 16, 8], strides = [1, 1, 1]} : vector<18x16x8xf32> to vector<16x16x8xf32>
    %36 = vector.extract_strided_slice %33 {offsets = [2, 0, 0], sizes = [16, 16, 8], strides = [1, 1, 1]} : vector<18x16x8xf32> to vector<16x16x8xf32>
    %37 = tpu.concatenate %34, %35, %36 in 2 : vector<16x16x8xf32>, vector<16x16x8xf32>, vector<16x16x8xf32> -> vector<16x16x24xf32>
    %38 = vector.shape_cast %37 : vector<16x16x24xf32> to vector<256x24xf32>
    %39 = arith.truncf %38 : vector<256x24xf32> to vector<256x24xbf16>
    %c2 = arith.constant 2 : index
    %c0_32 = arith.constant 0 : index
    %c0_33 = arith.constant 0 : index
    %40 = vector.load %arg2[%c2, %c0_32, %c0_33] : memref<3x24x64xbf16, #tpu.memory_space<vmem>>, vector<1x24x64xbf16>
    %41 = vector.shape_cast %40 : vector<1x24x64xbf16> to vector<24x64xbf16>
    %cst_34 = arith.constant dense<0.000000e+00> : vector<256x64xf32>
    %42 = tpu.matmul %39, %41, %cst_34 {dimension_numbers = #tpu.dot_dimension_numbers<[1], [0], [0], [1], [0, 0, 1, 1], [], []>} : vector<256x24xbf16>, vector<24x64xbf16>, vector<256x64xf32> -> vector<256x64xf32>
    %43 = arith.addf %32, %42 : vector<256x64xf32>
    %cst_35 = arith.constant 0.000000e+00 : f32
    %44 = vector.broadcast %cst_35 : f32 to vector<256x64xf32>
    %45 = arith.maximumf %43, %44 : vector<256x64xf32>
    %46 = vector.shape_cast %45 : vector<256x64xf32> to vector<8x2x16x64xf32>
    %cst_36 = arith.constant dense<0xFF800000> : vector<8x16x64xf32>
    %47 = vector.multi_reduction <maximumf>, %46, %cst_36 [1] : vector<8x2x16x64xf32> to vector<8x16x64xf32>
    %c0_37 = arith.constant 0 : index
    %c0_38 = arith.constant 0 : index
    %c0_39 = arith.constant 0 : index
    %48 = vector.load %arg8[%c0_37, %c0_38, %c0_39] : memref<8x16x64xf32, #tpu.memory_space<vmem>>, vector<8x16x64xf32>
    tpu.vector_store %arg8[%c0_37, %c0_38, %c0_39], %47 {strides = array<i32>} : memref<8x16x64xf32, #tpu.memory_space<vmem>>, vector<8x16x64xf32>,
    %c0_40 = arith.constant 0 : index
    %c0_41 = arith.constant 0 : index
    %c0_42 = arith.constant 0 : index
    %49 = tpu.strided_load %arg8[%c0_40, %c0_41, %c0_42] {strides = array<i32: 1, 2, 1>} : memref<8x16x64xf32, #tpu.memory_space<vmem>>, vector<8x8x64xf32>
    %c0_43 = arith.constant 0 : index
    %c1_44 = arith.constant 1 : index
    %c0_45 = arith.constant 0 : index
    %50 = tpu.strided_load %arg8[%c0_43, %c1_44, %c0_45] {strides = array<i32: 1, 2, 1>} : memref<8x16x64xf32, #tpu.memory_space<vmem>>, vector<8x8x64xf32>
    %51 = arith.maximumf %49, %50 : vector<8x8x64xf32>
    %52 = vector.shape_cast %51 : vector<8x8x64xf32> to vector<1x8x8x64xf32>
    %c0_46 = arith.constant 0 : index
    %c0_47 = arith.constant 0 : index
    %c0_48 = arith.constant 0 : index
    %c0_49 = arith.constant 0 : index
    %53 = vector.load %arg4[%c0_46, %c0_47, %c0_48, %c0_49] : memref<1x8x8x64xf32, #tpu.memory_space<vmem>>, vector<1x8x8x64xf32>
    tpu.vector_store %arg4[%c0_46, %c0_47, %c0_48, %c0_49], %52 {strides = array<i32>} : memref<1x8x8x64xf32, #tpu.memory_space<vmem>>, vector<1x8x8x64xf32>,
    %54 = vector.shape_cast %51 : vector<8x8x64xf32> to vector<64x64xf32>
    %cst_50 = arith.constant dense<0x7F800000> : vector<64xf32>
    %55 = vector.multi_reduction <minimumf>, %54, %cst_50 [0] : vector<64x64xf32> to vector<64xf32>
    %56 = vector.shape_cast %55 : vector<64xf32> to vector<1x64xf32>
    %cst_51 = arith.constant dense<0xFF800000> : vector<64xf32>
    %57 = vector.multi_reduction <maximumf>, %54, %cst_51 [0] : vector<64x64xf32> to vector<64xf32>
    %58 = vector.shape_cast %57 : vector<64xf32> to vector<1x64xf32>
    %c0_i32 = arith.constant 0 : i32
    %59 = arith.cmpi eq, %arg0, %c0_i32 : i32
    %60 = arith.extui %59 : i1 to i32
    %c0_i32_52 = arith.constant 0 : i32
    %61 = arith.cmpi ne, %60, %c0_i32_52 : i32
    scf.if %61 {
      %c0_55 = arith.constant 0 : index
      %c0_56 = arith.constant 0 : index
      %65 = vector.load %arg5[%c0_55, %c0_56] : memref<1x64xf32, #tpu.memory_space<vmem>>, vector<1x64xf32>
      tpu.vector_store %arg5[%c0_55, %c0_56], %56 {strides = array<i32>} : memref<1x64xf32, #tpu.memory_space<vmem>>, vector<1x64xf32>,
      %c0_57 = arith.constant 0 : index
      %c0_58 = arith.constant 0 : index
      %66 = vector.load %arg6[%c0_57, %c0_58] : memref<1x64xf32, #tpu.memory_space<vmem>>, vector<1x64xf32>
      tpu.vector_store %arg6[%c0_57, %c0_58], %58 {strides = array<i32>} : memref<1x64xf32, #tpu.memory_space<vmem>>, vector<1x64xf32>,
    } else {
    }
    %c0_i32_53 = arith.constant 0 : i32
    %62 = arith.cmpi sgt, %arg0, %c0_i32_53 : i32
    %63 = arith.extui %62 : i1 to i32
    %c0_i32_54 = arith.constant 0 : i32
    %64 = arith.cmpi ne, %63, %c0_i32_54 : i32
    scf.if %64 {
      %c0_55 = arith.constant 0 : index
      %c0_56 = arith.constant 0 : index
      %65 = vector.load %arg5[%c0_55, %c0_56] : memref<1x64xf32, #tpu.memory_space<vmem>>, vector<1x64xf32>
      %66 = arith.minimumf %65, %56 : vector<1x64xf32>
      %c0_57 = arith.constant 0 : index
      %c0_58 = arith.constant 0 : index
      %67 = vector.load %arg5[%c0_57, %c0_58] : memref<1x64xf32, #tpu.memory_space<vmem>>, vector<1x64xf32>
      tpu.vector_store %arg5[%c0_57, %c0_58], %66 {strides = array<i32>} : memref<1x64xf32, #tpu.memory_space<vmem>>, vector<1x64xf32>,
      %c0_59 = arith.constant 0 : index
      %c0_60 = arith.constant 0 : index
      %68 = vector.load %arg6[%c0_59, %c0_60] : memref<1x64xf32, #tpu.memory_space<vmem>>, vector<1x64xf32>
      %69 = arith.maximumf %68, %58 : vector<1x64xf32>
      %c0_61 = arith.constant 0 : index
      %c0_62 = arith.constant 0 : index
      %70 = vector.load %arg6[%c0_61, %c0_62] : memref<1x64xf32, #tpu.memory_space<vmem>>, vector<1x64xf32>
      tpu.vector_store %arg6[%c0_61, %c0_62], %69 {strides = array<i32>} : memref<1x64xf32, #tpu.memory_space<vmem>>, vector<1x64xf32>,
    } else {
    }
    return
  }
  func.func @transform_0(%arg0: i32) -> (i32, i32, i32, i32) {
    %c0_i32 = arith.constant 0 : i32
    %c0_i32_0 = arith.constant 0 : i32
    %c0_i32_1 = arith.constant 0 : i32
    %c0_i32_2 = arith.constant 0 : i32
    return %arg0, %c0_i32, %c0_i32_0, %c0_i32_1 : i32, i32, i32, i32
  }
  func.func @transform_1(%arg0: i32) -> (i32, i32, i32) {
    %c0_i32 = arith.constant 0 : i32
    %c0_i32_0 = arith.constant 0 : i32
    %c0_i32_1 = arith.constant 0 : i32
    %c0_i32_2 = arith.constant 0 : i32
    return %c0_i32, %c0_i32_0, %c0_i32_1 : i32, i32, i32
  }
  func.func @transform_2(%arg0: i32) -> (i32, i32) {
    %c0_i32 = arith.constant 0 : i32
    %c0_i32_0 = arith.constant 0 : i32
    %c0_i32_1 = arith.constant 0 : i32
    return %c0_i32, %c0_i32_0 : i32, i32
  }
  func.func @transform_3(%arg0: i32) -> (i32, i32, i32, i32) {
    %c0_i32 = arith.constant 0 : i32
    %c0_i32_0 = arith.constant 0 : i32
    %c0_i32_1 = arith.constant 0 : i32
    %c0_i32_2 = arith.constant 0 : i32
    return %arg0, %c0_i32, %c0_i32_0, %c0_i32_1 : i32, i32, i32, i32
  }
  func.func @transform_4(%arg0: i32) -> (i32, i32) {
    %c0_i32 = arith.constant 0 : i32
    %c0_i32_0 = arith.constant 0 : i32
    %c0_i32_1 = arith.constant 0 : i32
    return %c0_i32, %c0_i32_0 : i32, i32
  }
  func.func @transform_5(%arg0: i32) -> (i32, i32) {
    %c0_i32 = arith.constant 0 : i32
    %c0_i32_0 = arith.constant 0 : i32
    %c0_i32_1 = arith.constant 0 : i32
    return %c0_i32, %c0_i32_0 : i32, i32
  }
}

</mosaic_0001>

<llo_original>
// kernel: tpu_custom_call.1
$region0: #{tpu_custom_call.1}
  #allocation0 [shape = 'u32[]', space=smem, size = 0x4, offset = 0x4, fixed_abs, tag = 'smem constant byte address 0x4 - core index']
  #allocation1 [shape = 'u32[144,128]{1,0:T(1,128)}', space=vmem, size = 0x12000, scoped, tag = 'internal scratch']
  #allocation2 [shape = 'f32[18,32,8]{2,1,0:T(8,128)}', space=vmem, size = 0x48000, scoped, tag = 'scratch operand']
  #allocation3 [shape = 'f32[8,16,64]{2,1,0:T(8,128)}', space=vmem, size = 0x10000, scoped, tag = 'scratch operand']
  %s0 = inlined_call_operand.vmem [shape: f32[2,16,16,8], index: 0, kind: input, shape index: {}]
  %s1 = inlined_call_operand.vmem [shape: bf16[3,24,64], index: 1, kind: input, shape index: {}]
  %s2 = inlined_call_operand.vmem [shape: f32[1,64], index: 2, kind: input, shape index: {}]
  %s3 = inlined_call_operand.hbm [shape: f32[2,8,8,64], index: 3, kind: output, shape index: {0}]
  %s4 = inlined_call_operand.hbm [shape: f32[1,64], index: 4, kind: output, shape index: {1}]
  %s5 = inlined_call_operand.hbm [shape: f32[1,64], index: 5, kind: output, shape index: {2}]
  %6 = xla_tuple %s3, %s4, %s5
  %s7 = sld [smem:[#allocation0]]
  $region69: #{tpu_custom_call.1} parent=0
    _
  %s9 = ssub.s32 1, %s7
  %s10 = scalar_select 0, %s9, %s7
  $region1: #{tpu_custom_call.1} parent=0
    #allocation4 [shape = 'u8[65536]{0}', space=vmem, size = 0x10000, scoped, tag = 'output window, operand 0']
    #allocation5 [shape = 's32[2]{0}', space=sflag, size = 0x8, scoped, tag = 'scoped memory for tpu_custom_call.1']
    #allocation6 [shape = 'u8[512]{0}', space=vmem, size = 0x400, scoped, tag = 'output window, operand 1, single buffered']
    #allocation7 [shape = 's32[1]{0}', space=sflag, size = 0x4, scoped, tag = 'scoped memory for tpu_custom_call.1']
    #allocation8 [shape = 'u8[512]{0}', space=vmem, size = 0x400, scoped, tag = 'output window, operand 2, single buffered']
    %11 = vsyncpa [#allocation5], 0
    %s12 = scalar_lea.sflag [#allocation5], 1
    %13 = vsyncpa %s12, 0
    %14 = vsyncpa [#allocation7], 0
    loop: start=0, step=1, limit=4
    $region2: #{tpu_custom_call.1} parent=1 // loop_pre_header
      _
    $region3: #{tpu_custom_call.1} parent=1 // loop_header
      %s16 = sphi 0, %s20
      %p17 = scmp.ge.s32.totalorder %s16, 4
      %s26 = sphi 0, %s28
      %s29 = sphi 0, %s26
      %s30 = sphi 0, %s29
      %s46 = sphi 0, %s30
      %s50 = sphi 0, %s50
      %s52 = sphi 0, %s50
      %s53 = sphi 0, %s52
      %s67 = sphi 0, %s53
      %s71 = sphi 0, %s71
      %s73 = sphi 0, %s71
      %s74 = sphi 0, %s73
      %s88 = sphi 0, %s74
      %s94 = sphi 0, %s96
      %s97 = sphi 0, %s94
      %s98 = sphi 0, %s97
      %s114 = sphi 0, %s98
      %s118 = sphi 0, %s118
      %s120 = sphi 0, %s118
      %s121 = sphi 0, %s120
      %s135 = sphi 0, %s121
      %s139 = sphi 0, %s139
      %s141 = sphi 0, %s139
      %s142 = sphi 0, %s141
      %s156 = sphi 0, %s142
    $region4: #{tpu_custom_call.1} parent=1 // loop_header_branch
      %19 = sbr.rel (%p17) target = $region8
    $region5: #{tpu_custom_call.1} parent=1 // loop_body
      %s21 = ssub.s32 %s16, 1
      %s22 = ssub.s32 %s16, 2
      %s23 = sadd.s32 %s16, 1
      %s24 = ssub.s32 %s16, %s23
      %p25 = scmp.eq.s32.totalorder %s24, 0
      %s27 = sadd.s32 %s26, 1
      %s28 = scalar_select %p25, %s26, %s27
      %p31 = pneg %p25
      %p32 = scmp.eq.s32.totalorder %s16, 1
      %p33 = por %p31, %p32
      %p34 = scmp.ne.s32.totalorder %s26, %s29
      %p35 = scmp.eq.s32.totalorder %s16, 0
      %p36 = por %p34, %p35
      %p37 = scmp.ne.s32.totalorder %s26, %s29
      %p38 = scmp.eq.s32.totalorder %s21, 1
      %p39 = por %p37, %p38
      %p40 = scmp.ne.s32.totalorder %s29, %s30
      %p41 = scmp.eq.s32.totalorder %s21, 0
      %p42 = por %p40, %p41
      %p43 = scmp.ne.s32.totalorder %s29, %s30
      %p44 = scmp.eq.s32.totalorder %s22, 1
      %p45 = por %p43, %p44
      %p47 = scmp.ne.s32.totalorder %s30, %s46
      %p48 = scmp.eq.s32.totalorder %s22, 0
      %p49 = por %p47, %p48
      %s51 = sadd.s32 %s50, 1
      %p54 = scmp.eq.s32.totalorder %s16, 1
      %p55 = scmp.ne.s32.totalorder %s50, %s52
      %p56 = scmp.eq.s32.totalorder %s16, 0
      %p57 = por %p55, %p56
      %p58 = scmp.ne.s32.totalorder %s50, %s52
      %p59 = scmp.eq.s32.totalorder %s21, 1
      %p60 = por %p58, %p59
      %p61 = scmp.ne.s32.totalorder %s52, %s53
      %p62 = scmp.eq.s32.totalorder %s21, 0
      %p63 = por %p61, %p62
      %p64 = scmp.ne.s32.totalorder %s52, %s53
      %p65 = scmp.eq.s32.totalorder %s22, 1
      %p66 = por %p64, %p65
      %p68 = scmp.ne.s32.totalorder %s53, %s67
      %p69 = scmp.eq.s32.totalorder %s22, 0
      %p70 = por %p68, %p69
      %s72 = sadd.s32 %s71, 1
      %p75 = scmp.eq.s32.totalorder %s16, 1
      %p76 = scmp.ne.s32.totalorder %s71, %s73
      %p77 = scmp.eq.s32.totalorder %s16, 0
      %p78 = por %p76, %p77
      %p79 = scmp.ne.s32.totalorder %s71, %s73
      %p80 = scmp.eq.s32.totalorder %s21, 1
      %p81 = por %p79, %p80
      %p82 = scmp.ne.s32.totalorder %s73, %s74
      %p83 = scmp.eq.s32.totalorder %s21, 0
      %p84 = por %p82, %p83
      %p85 = scmp.ne.s32.totalorder %s73, %s74
      %p86 = scmp.eq.s32.totalorder %s22, 1
      %p87 = por %p85, %p86
      %p89 = scmp.ne.s32.totalorder %s74, %s88
      %p90 = scmp.eq.s32.totalorder %s22, 0
      %p91 = por %p89, %p90
      %s92 = ssub.s32 %s16, %s23
      %p93 = scmp.eq.s32.totalorder %s92, 0
      %s95 = sadd.s32 %s94, 1
      %s96 = scalar_select %p93, %s94, %s95
      %p99 = pneg %p93
      %p100 = scmp.eq.s32.totalorder %s16, 1
      %p101 = por %p99, %p100
      %p102 = scmp.ne.s32.totalorder %s94, %s97
      %p103 = scmp.eq.s32.totalorder %s16, 0
      %p104 = por %p102, %p103
      %p105 = scmp.ne.s32.totalorder %s94, %s97
      %p106 = scmp.eq.s32.totalorder %s21, 1
      %p107 = por %p105, %p106
      %p108 = scmp.ne.s32.totalorder %s97, %s98
      %p109 = scmp.eq.s32.totalorder %s21, 0
      %p110 = por %p108, %p109
      %p111 = scmp.ne.s32.totalorder %s97, %s98
      %p112 = scmp.eq.s32.totalorder %s22, 1
      %p113 = por %p111, %p112
      %p115 = scmp.ne.s32.totalorder %s98, %s114
      %p116 = scmp.eq.s32.totalorder %s22, 0
      %p117 = por %p115, %p116
      %s119 = sadd.s32 %s118, 1
      %p122 = scmp.eq.s32.totalorder %s16, 1
      %p123 = scmp.ne.s32.totalorder %s118, %s120
      %p124 = scmp.eq.s32.totalorder %s16, 0
      %p125 = por %p123, %p124
      %p126 = scmp.ne.s32.totalorder %s118, %s120
      %p127 = scmp.eq.s32.totalorder %s21, 1
      %p128 = por %p126, %p127
      %p129 = scmp.ne.s32.totalorder %s120, %s121
      %p130 = scmp.eq.s32.totalorder %s21, 0
      %p131 = por %p129, %p130
      %p132 = scmp.ne.s32.totalorder %s120, %s121
      %p133 = scmp.eq.s32.totalorder %s22, 1
      %p134 = por %p132, %p133
      %p136 = scmp.ne.s32.totalorder %s121, %s135
      %p137 = scmp.eq.s32.totalorder %s22, 0
      %p138 = por %p136, %p137
      %s140 = sadd.s32 %s139, 1
      %p143 = scmp.eq.s32.totalorder %s16, 1
      %p144 = scmp.ne.s32.totalorder %s139, %s141
      %p145 = scmp.eq.s32.totalorder %s16, 0
      %p146 = por %p144, %p145
      %p147 = scmp.ne.s32.totalorder %s139, %s141
      %p148 = scmp.eq.s32.totalorder %s21, 1
      %p149 = por %p147, %p148
      %p150 = scmp.ne.s32.totalorder %s141, %s142
      %p151 = scmp.eq.s32.totalorder %s21, 0
      %p152 = por %p150, %p151
      %p153 = scmp.ne.s32.totalorder %s141, %s142
      %p154 = scmp.eq.s32.totalorder %s22, 1
      %p155 = por %p153, %p154
      %p157 = scmp.ne.s32.totalorder %s142, %s156
      %p158 = scmp.eq.s32.totalorder %s22, 0
      %p159 = por %p157, %p158
      %p160 = scmp.le.s32.totalorder 1, %s16
      %p161 = scmp.lt.s32.totalorder %s16, 3
      %p162 = pnand %p160, %p161
      %p163 = pneg %p162
      // Predicated region
      $region9: #{tpu_custom_call.1} parent=5 // pred_check
        _
      $region10: #{tpu_custom_call.1} parent=5 // pred_check_branch
        %165 = sbr.rel (%p162) target = $region12
      $region11: #{tpu_custom_call.1} parent=5 // pred_region
        %s166 = ssub.s32 %s16, 1
        // Predicated region
        $region13: #{tpu_custom_call.1} parent=11 // pred_check
          %p167 = pneg %p63
        $region14: #{tpu_custom_call.1} parent=11 // pred_check_branch
          %169 = sbr.rel (%p167) target = $region16
        $region15: #{tpu_custom_call.1} parent=11 // pred_region
          _
        $region16: #{tpu_custom_call.1} parent=11 // pred_fallthru
          _
        // Predicated region
        $region17: #{tpu_custom_call.1} parent=11 // pred_check
          %p170 = pneg %p84
        $region18: #{tpu_custom_call.1} parent=11 // pred_check_branch
          %172 = sbr.rel (%p170) target = $region20
        $region19: #{tpu_custom_call.1} parent=11 // pred_region
          _
        $region20: #{tpu_custom_call.1} parent=11 // pred_fallthru
          _
      $region12: #{tpu_custom_call.1} parent=5 // pred_fallthru
        _
      %p173 = scmp.lt.s32.totalorder %s16, 2
      // Predicated region
      $region21: #{tpu_custom_call.1} parent=5 // pred_check
        %p174 = pneg %p173
      $region22: #{tpu_custom_call.1} parent=5 // pred_check_branch
        %176 = sbr.rel (%p174) target = $region24
      $region23: #{tpu_custom_call.1} parent=5 // pred_region
        // Predicated region
        $region25: #{tpu_custom_call.1} parent=23 // pred_check
          %p177 = pneg %p36
        $region26: #{tpu_custom_call.1} parent=23 // pred_check_branch
          %179 = sbr.rel (%p177) target = $region28
        $region27: #{tpu_custom_call.1} parent=23 // pred_region
          %p180 = scmp.lt.s32.totalorder %s16, 1
          %s181 = scalar_select %p180, %s16, 1
          %s182 = smul.addr %s181, 32
          %s183 = smul.addr %s182, 8
          %s184 = scalar_lea.vmem %s0, %s183
        $region28: #{tpu_custom_call.1} parent=23 // pred_fallthru
          _
      $region24: #{tpu_custom_call.1} parent=5 // pred_fallthru
        _
      %p185 = scmp.le.s32.totalorder 1, %s16
      %p186 = scmp.lt.s32.totalorder %s16, 3
      %p187 = pnand %p185, %p186
      %p188 = pneg %p187
      // Predicated region
      $region29: #{tpu_custom_call.1} parent=5 // pred_check
        _
      $region30: #{tpu_custom_call.1} parent=5 // pred_check_branch
        %190 = sbr.rel (%p187) target = $region32
      $region31: #{tpu_custom_call.1} parent=5 // pred_region
        %s191 = ssub.s32 %s16, 1
        %p192 = scmp.lt.s32.totalorder %s21, 1
        %s193 = scalar_select %p192, %s21, 1
        %s194 = smul.addr %s193, 32
        %s195 = smul.addr %s194, 8
        %s196 = scalar_lea.vmem %s0, %s195
        %p197 = pneg %p42
        %p198 = pneg %p39
        %p199 = pneg %p63
        %p200 = pneg %p60
        %p201 = pneg %p84
        %p202 = pneg %p81
        %p203 = pneg %p110
        %p204 = pneg %p107
        %s205 = sand.u32 %s97, 1
        %s206 = scalar_lea.sflag [#allocation5], %s205
        %s207 = sand.u32 %s97, 1
        %s208 = smul.addr %s207, 64
        %s209 = scalar_lea.vmem [#allocation4], %s208
        %p210 = pneg %p131
        %p211 = pneg %p128
        %p212 = pneg %p152
        %p213 = pneg %p149
        %p214 = scmp.lt.s32.totalorder %s21, 1
        %s215 = scalar_select %p214, %s21, 1
        %s216 = smul.addr %s215, 32
        %s217 = smul.addr %s216, 8
        %s218 = scalar_lea.vmem %s0, %s217
        %v220 = vld [vmem:[%s218] sm:$0xff]
        %v221 = vld [vmem:[%s218 + $0x8] sm:$0xff]
        %v222 = vld [vmem:[%s218 + $0x10] sm:$0xff]
        %v223 = vld [vmem:[%s218 + $0x18] sm:$0xff]
        %v224 = vld [vmem:[%s218 + $0x20] sm:$0xff]
        %v225 = vld [vmem:[%s218 + $0x28] sm:$0xff]
        %v226 = vld [vmem:[%s218 + $0x30] sm:$0xff]
        %v227 = vld [vmem:[%s218 + $0x38] sm:$0xff]
        %v228 = vld [vmem:[%s218 + $0x40] sm:$0xff]
        %v229 = vld [vmem:[%s218 + $0x48] sm:$0xff]
        %v230 = vld [vmem:[%s218 + $0x50] sm:$0xff]
        %v231 = vld [vmem:[%s218 + $0x58] sm:$0xff]
        %v232 = vld [vmem:[%s218 + $0x60] sm:$0xff]
        %v233 = vld [vmem:[%s218 + $0x68] sm:$0xff]
        %v234 = vld [vmem:[%s218 + $0x70] sm:$0xff]
        %v235 = vld [vmem:[%s218 + $0x78] sm:$0xff]
        %v236 = vld [vmem:[%s218 + $0x80] sm:$0xff]
        %v237 = vld [vmem:[%s218 + $0x88] sm:$0xff]
        %v238 = vld [vmem:[%s218 + $0x90] sm:$0xff]
        %v239 = vld [vmem:[%s218 + $0x98] sm:$0xff]
        %v240 = vld [vmem:[%s218 + $0xa0] sm:$0xff]
        %v241 = vld [vmem:[%s218 + $0xa8] sm:$0xff]
        %v242 = vld [vmem:[%s218 + $0xb0] sm:$0xff]
        %v243 = vld [vmem:[%s218 + $0xb8] sm:$0xff]
        %v244 = vld [vmem:[%s218 + $0xc0] sm:$0xff]
        %v245 = vld [vmem:[%s218 + $0xc8] sm:$0xff]
        %v246 = vld [vmem:[%s218 + $0xd0] sm:$0xff]
        %v247 = vld [vmem:[%s218 + $0xd8] sm:$0xff]
        %v248 = vld [vmem:[%s218 + $0xe0] sm:$0xff]
        %v249 = vld [vmem:[%s218 + $0xe8] sm:$0xff]
        %v250 = vld [vmem:[%s218 + $0xf0] sm:$0xff]
        %v251 = vld [vmem:[%s218 + $0xf8] sm:$0xff]
        %vm252 = vcmask 64512
        %253 = vst.msk [vmem:[#allocation2] sm:$0xff] %vm252, 0.0
        %254 = vst.msk [vmem:[#allocation2 + $0x20] sm:$0xff] %vm252, 0.0
        %255 = vst.msk [vmem:[#allocation2 + $0x40] sm:$0xff] %vm252, 0.0
        %256 = vst.msk [vmem:[#allocation2 + $0x60] sm:$0xff] %vm252, 0.0
        %257 = vst.msk [vmem:[#allocation2 + $0x80] sm:$0xff] %vm252, 0.0
        %258 = vst.msk [vmem:[#allocation2 + $0xa0] sm:$0xff] %vm252, 0.0
        %259 = vst.msk [vmem:[#allocation2 + $0xc0] sm:$0xff] %vm252, 0.0
        %260 = vst.msk [vmem:[#allocation2 + $0xe0] sm:$0xff] %vm252, 0.0
        %261 = vst.msk [vmem:[#allocation2 + $0x100] sm:$0xff] %vm252, 0.0
        %262 = vst.msk [vmem:[#allocation2 + $0x120] sm:$0xff] %vm252, 0.0
        %263 = vst.msk [vmem:[#allocation2 + $0x140] sm:$0xff] %vm252, 0.0
        %264 = vst.msk [vmem:[#allocation2 + $0x160] sm:$0xff] %vm252, 0.0
        %265 = vst.msk [vmem:[#allocation2 + $0x180] sm:$0xff] %vm252, 0.0
        %266 = vst.msk [vmem:[#allocation2 + $0x1a0] sm:$0xff] %vm252, 0.0
        %267 = vst.msk [vmem:[#allocation2 + $0x1c0] sm:$0xff] %vm252, 0.0
        %268 = vst.msk [vmem:[#allocation2 + $0x1e0] sm:$0xff] %vm252, 0.0
        %269 = vst.msk [vmem:[#allocation2 + $0x200] sm:$0xff] %vm252, 0.0
        %270 = vst.msk [vmem:[#allocation2 + $0x220] sm:$0xff] %vm252, 0.0
        %271 = vst.msk [vmem:[#allocation2 + $0x18] sm:$0xff] %vm252, 0.0
        %272 = vst.msk [vmem:[#allocation2 + $0x38] sm:$0xff] %vm252, 0.0
        %273 = vst.msk [vmem:[#allocation2 + $0x58] sm:$0xff] %vm252, 0.0
        %274 = vst.msk [vmem:[#allocation2 + $0x78] sm:$0xff] %vm252, 0.0
        %275 = vst.msk [vmem:[#allocation2 + $0x98] sm:$0xff] %vm252, 0.0
        %276 = vst.msk [vmem:[#allocation2 + $0xb8] sm:$0xff] %vm252, 0.0
        %277 = vst.msk [vmem:[#allocation2 + $0xd8] sm:$0xff] %vm252, 0.0
        %278 = vst.msk [vmem:[#allocation2 + $0xf8] sm:$0xff] %vm252, 0.0
        %279 = vst.msk [vmem:[#allocation2 + $0x118] sm:$0xff] %vm252, 0.0
        %280 = vst.msk [vmem:[#allocation2 + $0x138] sm:$0xff] %vm252, 0.0
        %281 = vst.msk [vmem:[#allocation2 + $0x158] sm:$0xff] %vm252, 0.0
        %282 = vst.msk [vmem:[#allocation2 + $0x178] sm:$0xff] %vm252, 0.0
        %283 = vst.msk [vmem:[#allocation2 + $0x198] sm:$0xff] %vm252, 0.0
        %284 = vst.msk [vmem:[#allocation2 + $0x1b8] sm:$0xff] %vm252, 0.0
        %285 = vst.msk [vmem:[#allocation2 + $0x1d8] sm:$0xff] %vm252, 0.0
        %286 = vst.msk [vmem:[#allocation2 + $0x1f8] sm:$0xff] %vm252, 0.0
        %287 = vst.msk [vmem:[#allocation2 + $0x218] sm:$0xff] %vm252, 0.0
        %288 = vst.msk [vmem:[#allocation2 + $0x238] sm:$0xff] %vm252, 0.0
        %289 = vst.msk [vmem:[#allocation2 + $0x8] sm:$0xff] %vm252, 0.0
        %290 = vst.msk [vmem:[#allocation2 + $0x10] sm:$0xff] %vm252, 0.0
        %s291 = scalar_lea.vmem [#allocation2], 544
        %292 = vst.msk [vmem:[%s291 + $0x8] sm:$0xff] %vm252, 0.0
        %293 = vst.msk [vmem:[%s291 + $0x10] sm:$0xff] %vm252, 0.0
        %s294 = scalar_lea.vmem [#allocation2], 32
        %295 = vst.msk [vmem:[%s294 + $0x8] sm:$0xff] %vm252, %v220
        %296 = vst.msk [vmem:[%s294 + $0x10] sm:$0xff] %vm252, %v221
        %297 = vst.msk [vmem:[%s294 + $0x28] sm:$0xff] %vm252, %v222
        %298 = vst.msk [vmem:[%s294 + $0x30] sm:$0xff] %vm252, %v223
        %299 = vst.msk [vmem:[%s294 + $0x48] sm:$0xff] %vm252, %v224
        %300 = vst.msk [vmem:[%s294 + $0x50] sm:$0xff] %vm252, %v225
        %301 = vst.msk [vmem:[%s294 + $0x68] sm:$0xff] %vm252, %v226
        %302 = vst.msk [vmem:[%s294 + $0x70] sm:$0xff] %vm252, %v227
        %303 = vst.msk [vmem:[%s294 + $0x88] sm:$0xff] %vm252, %v228
        %304 = vst.msk [vmem:[%s294 + $0x90] sm:$0xff] %vm252, %v229
        %305 = vst.msk [vmem:[%s294 + $0xa8] sm:$0xff] %vm252, %v230
        %306 = vst.msk [vmem:[%s294 + $0xb0] sm:$0xff] %vm252, %v231
        %307 = vst.msk [vmem:[%s294 + $0xc8] sm:$0xff] %vm252, %v232
        %308 = vst.msk [vmem:[%s294 + $0xd0] sm:$0xff] %vm252, %v233
        %309 = vst.msk [vmem:[%s294 + $0xe8] sm:$0xff] %vm252, %v234
        %310 = vst.msk [vmem:[%s294 + $0xf0] sm:$0xff] %vm252, %v235
        %311 = vst.msk [vmem:[%s294 + $0x108] sm:$0xff] %vm252, %v236
        %312 = vst.msk [vmem:[%s294 + $0x110] sm:$0xff] %vm252, %v237
        %313 = vst.msk [vmem:[%s294 + $0x128] sm:$0xff] %vm252, %v238
        %314 = vst.msk [vmem:[%s294 + $0x130] sm:$0xff] %vm252, %v239
        %315 = vst.msk [vmem:[%s294 + $0x148] sm:$0xff] %vm252, %v240
        %316 = vst.msk [vmem:[%s294 + $0x150] sm:$0xff] %vm252, %v241
        %317 = vst.msk [vmem:[%s294 + $0x168] sm:$0xff] %vm252, %v242
        %318 = vst.msk [vmem:[%s294 + $0x170] sm:$0xff] %vm252, %v243
        %319 = vst.msk [vmem:[%s294 + $0x188] sm:$0xff] %vm252, %v244
        %320 = vst.msk [vmem:[%s294 + $0x190] sm:$0xff] %vm252, %v245
        %321 = vst.msk [vmem:[%s294 + $0x1a8] sm:$0xff] %vm252, %v246
        %322 = vst.msk [vmem:[%s294 + $0x1b0] sm:$0xff] %vm252, %v247
        %323 = vst.msk [vmem:[%s294 + $0x1c8] sm:$0xff] %vm252, %v248
        %324 = vst.msk [vmem:[%s294 + $0x1d0] sm:$0xff] %vm252, %v249
        %325 = vst.msk [vmem:[%s294 + $0x1e8] sm:$0xff] %vm252, %v250
        %326 = vst.msk [vmem:[%s294 + $0x1f0] sm:$0xff] %vm252, %v251
        %v327 = vld [vmem:[%s2] sm:$0x1]
        %v328 = vld [vmem:[#allocation2 + $0x7] sm:$0xff]
        %v329 = vld [vmem:[#allocation2 + $0xf] sm:$0xff]
        %v330 = vld [vmem:[#allocation2 + $0x27] sm:$0xff]
        %v331 = vld [vmem:[#allocation2 + $0x2f] sm:$0xff]
        %v332 = vld [vmem:[#allocation2 + $0x47] sm:$0xff]
        %v333 = vld [vmem:[#allocation2 + $0x4f] sm:$0xff]
        %v334 = vld [vmem:[#allocation2 + $0x67] sm:$0xff]
        %v335 = vld [vmem:[#allocation2 + $0x6f] sm:$0xff]
        %v336 = vld [vmem:[#allocation2 + $0x87] sm:$0xff]
        %v337 = vld [vmem:[#allocation2 + $0x8f] sm:$0xff]
        %v338 = vld [vmem:[#allocation2 + $0xa7] sm:$0xff]
        %v339 = vld [vmem:[#allocation2 + $0xaf] sm:$0xff]
        %v340 = vld [vmem:[#allocation2 + $0xc7] sm:$0xff]
        %v341 = vld [vmem:[#allocation2 + $0xcf] sm:$0xff]
        %v342 = vld [vmem:[#allocation2 + $0xe7] sm:$0xff]
        %v343 = vld [vmem:[#allocation2 + $0xef] sm:$0xff]
        %v344 = vld [vmem:[#allocation2 + $0x107] sm:$0xff]
        %v345 = vld [vmem:[#allocation2 + $0x10f] sm:$0xff]
        %v346 = vld [vmem:[#allocation2 + $0x127] sm:$0xff]
        %v347 = vld [vmem:[#allocation2 + $0x12f] sm:$0xff]
        %v348 = vld [vmem:[#allocation2 + $0x147] sm:$0xff]
        %v349 = vld [vmem:[#allocation2 + $0x14f] sm:$0xff]
        %v350 = vld [vmem:[#allocation2 + $0x167] sm:$0xff]
        %v351 = vld [vmem:[#allocation2 + $0x16f] sm:$0xff]
        %v352 = vld [vmem:[#allocation2 + $0x187] sm:$0xff]
        %v353 = vld [vmem:[#allocation2 + $0x18f] sm:$0xff]
        %v354 = vld [vmem:[#allocation2 + $0x1a7] sm:$0xff]
        %v355 = vld [vmem:[#allocation2 + $0x1af] sm:$0xff]
        %v356 = vld [vmem:[#allocation2 + $0x1c7] sm:$0xff]
        %v357 = vld [vmem:[#allocation2 + $0x1cf] sm:$0xff]
        %v358 = vld [vmem:[#allocation2 + $0x1e7] sm:$0xff]
        %v359 = vld [vmem:[#allocation2 + $0x1ef] sm:$0xff]
        %v360 = vld [vmem:[#allocation2 + $0x207] sm:$0xff]
        %v361 = vld [vmem:[#allocation2 + $0x20f] sm:$0xff]
        %v362 = vld [vmem:[#allocation2 + $0x227] sm:$0xff]
        %v363 = vld [vmem:[#allocation2 + $0x22f] sm:$0xff]
        %396 = vrot.lane.b32.xlu0 %v330, 8
        %v397 = vpop.permute.xlu0 %396
        %398 = vrot.lane.b32.xlu0 %v331, 8
        %v399 = vpop.permute.xlu0 %398
        %400 = vrot.lane.b32.xlu0 %v332, 8
        %v401 = vpop.permute.xlu0 %400
        %402 = vrot.lane.b32.xlu0 %v333, 8
        %v403 = vpop.permute.xlu0 %402
        %404 = vrot.lane.b32.xlu0 %v334, 8
        %v405 = vpop.permute.xlu0 %404
        %406 = vrot.lane.b32.xlu0 %v335, 8
        %v407 = vpop.permute.xlu0 %406
        %408 = vrot.lane.b32.xlu0 %v336, 8
        %v409 = vpop.permute.xlu0 %408
        %410 = vrot.lane.b32.xlu0 %v337, 8
        %v411 = vpop.permute.xlu0 %410
        %412 = vrot.lane.b32.xlu0 %v338, 8
        %v413 = vpop.permute.xlu0 %412
        %414 = vrot.lane.b32.xlu0 %v339, 8
        %v415 = vpop.permute.xlu0 %414
        %416 = vrot.lane.b32.xlu0 %v340, 8
        %v417 = vpop.permute.xlu0 %416
        %418 = vrot.lane.b32.xlu0 %v341, 8
        %v419 = vpop.permute.xlu0 %418
        %420 = vrot.lane.b32.xlu0 %v342, 8
        %v421 = vpop.permute.xlu0 %420
        %422 = vrot.lane.b32.xlu0 %v343, 8
        %v423 = vpop.permute.xlu0 %422
        %424 = vrot.lane.b32.xlu0 %v344, 8
        %v425 = vpop.permute.xlu0 %424
        %426 = vrot.lane.b32.xlu0 %v345, 8
        %v427 = vpop.permute.xlu0 %426
        %428 = vrot.lane.b32.xlu0 %v346, 8
        %v429 = vpop.permute.xlu0 %428
        %430 = vrot.lane.b32.xlu0 %v347, 8
        %v431 = vpop.permute.xlu0 %430
        %432 = vrot.lane.b32.xlu0 %v348, 8
        %v433 = vpop.permute.xlu0 %432
        %434 = vrot.lane.b32.xlu0 %v349, 8
        %v435 = vpop.permute.xlu0 %434
        %436 = vrot.lane.b32.xlu0 %v350, 8
        %v437 = vpop.permute.xlu0 %436
        %438 = vrot.lane.b32.xlu0 %v351, 8
        %v439 = vpop.permute.xlu0 %438
        %440 = vrot.lane.b32.xlu0 %v352, 8
        %v441 = vpop.permute.xlu0 %440
        %442 = vrot.lane.b32.xlu0 %v353, 8
        %v443 = vpop.permute.xlu0 %442
        %444 = vrot.lane.b32.xlu0 %v354, 8
        %v445 = vpop.permute.xlu0 %444
        %446 = vrot.lane.b32.xlu0 %v355, 8
        %v447 = vpop.permute.xlu0 %446
        %448 = vrot.lane.b32.xlu0 %v356, 8
        %v449 = vpop.permute.xlu0 %448
        %450 = vrot.lane.b32.xlu0 %v357, 8
        %v451 = vpop.permute.xlu0 %450
        %452 = vrot.lane.b32.xlu0 %v358, 8
        %v453 = vpop.permute.xlu0 %452
        %454 = vrot.lane.b32.xlu0 %v359, 8
        %v455 = vpop.permute.xlu0 %454
        %456 = vrot.lane.b32.xlu0 %v360, 8
        %v457 = vpop.permute.xlu0 %456
        %458 = vrot.lane.b32.xlu0 %v361, 8
        %v459 = vpop.permute.xlu0 %458
        %494 = vrot.lane.b32.xlu0 %v332, 16
        %v495 = vpop.permute.xlu0 %494
        %496 = vrot.lane.b32.xlu0 %v333, 16
        %v497 = vpop.permute.xlu0 %496
        %498 = vrot.lane.b32.xlu0 %v334, 16
        %v499 = vpop.permute.xlu0 %498
        %500 = vrot.lane.b32.xlu0 %v335, 16
        %v501 = vpop.permute.xlu0 %500
        %502 = vrot.lane.b32.xlu0 %v336, 16
        %v503 = vpop.permute.xlu0 %502
        %504 = vrot.lane.b32.xlu0 %v337, 16
        %v505 = vpop.permute.xlu0 %504
        %506 = vrot.lane.b32.xlu0 %v338, 16
        %v507 = vpop.permute.xlu0 %506
        %508 = vrot.lane.b32.xlu0 %v339, 16
        %v509 = vpop.permute.xlu0 %508
        %510 = vrot.lane.b32.xlu0 %v340, 16
        %v511 = vpop.permute.xlu0 %510
        %512 = vrot.lane.b32.xlu0 %v341, 16
        %v513 = vpop.permute.xlu0 %512
        %514 = vrot.lane.b32.xlu0 %v342, 16
        %v515 = vpop.permute.xlu0 %514
        %516 = vrot.lane.b32.xlu0 %v343, 16
        %v517 = vpop.permute.xlu0 %516
        %518 = vrot.lane.b32.xlu0 %v344, 16
        %v519 = vpop.permute.xlu0 %518
        %520 = vrot.lane.b32.xlu0 %v345, 16
        %v521 = vpop.permute.xlu0 %520
        %522 = vrot.lane.b32.xlu0 %v346, 16
        %v523 = vpop.permute.xlu0 %522
        %524 = vrot.lane.b32.xlu0 %v347, 16
        %v525 = vpop.permute.xlu0 %524
        %526 = vrot.lane.b32.xlu0 %v348, 16
        %v527 = vpop.permute.xlu0 %526
        %528 = vrot.lane.b32.xlu0 %v349, 16
        %v529 = vpop.permute.xlu0 %528
        %530 = vrot.lane.b32.xlu0 %v350, 16
        %v531 = vpop.permute.xlu0 %530
        %532 = vrot.lane.b32.xlu0 %v351, 16
        %v533 = vpop.permute.xlu0 %532
        %534 = vrot.lane.b32.xlu0 %v352, 16
        %v535 = vpop.permute.xlu0 %534
        %536 = vrot.lane.b32.xlu0 %v353, 16
        %v537 = vpop.permute.xlu0 %536
        %538 = vrot.lane.b32.xlu0 %v354, 16
        %v539 = vpop.permute.xlu0 %538
        %540 = vrot.lane.b32.xlu0 %v355, 16
        %v541 = vpop.permute.xlu0 %540
        %542 = vrot.lane.b32.xlu0 %v356, 16
        %v543 = vpop.permute.xlu0 %542
        %544 = vrot.lane.b32.xlu0 %v357, 16
        %v545 = vpop.permute.xlu0 %544
        %546 = vrot.lane.b32.xlu0 %v358, 16
        %v547 = vpop.permute.xlu0 %546
        %548 = vrot.lane.b32.xlu0 %v359, 16
        %v549 = vpop.permute.xlu0 %548
        %550 = vrot.lane.b32.xlu0 %v360, 16
        %v551 = vpop.permute.xlu0 %550
        %552 = vrot.lane.b32.xlu0 %v361, 16
        %v553 = vpop.permute.xlu0 %552
        %554 = vrot.lane.b32.xlu0 %v362, 16
        %v555 = vpop.permute.xlu0 %554
        %556 = vrot.lane.b32.xlu0 %v363, 16
        %v557 = vpop.permute.xlu0 %556
        %v590 = vsel %vm252, %v328, %v397
        %v591 = vsel %vm252, %v329, %v399
        %v592 = vsel %vm252, %v330, %v401
        %v593 = vsel %vm252, %v331, %v403
        %v594 = vsel %vm252, %v332, %v405
        %v595 = vsel %vm252, %v333, %v407
        %v596 = vsel %vm252, %v334, %v409
        %v597 = vsel %vm252, %v335, %v411
        %v598 = vsel %vm252, %v336, %v413
        %v599 = vsel %vm252, %v337, %v415
        %v600 = vsel %vm252, %v338, %v417
        %v601 = vsel %vm252, %v339, %v419
        %v602 = vsel %vm252, %v340, %v421
        %v603 = vsel %vm252, %v341, %v423
        %v604 = vsel %vm252, %v342, %v425
        %v605 = vsel %vm252, %v343, %v427
        %v606 = vsel %vm252, %v344, %v429
        %v607 = vsel %vm252, %v345, %v431
        %v608 = vsel %vm252, %v346, %v433
        %v609 = vsel %vm252, %v347, %v435
        %v610 = vsel %vm252, %v348, %v437
        %v611 = vsel %vm252, %v349, %v439
        %v612 = vsel %vm252, %v350, %v441
        %v613 = vsel %vm252, %v351, %v443
        %v614 = vsel %vm252, %v352, %v445
        %v615 = vsel %vm252, %v353, %v447
        %v616 = vsel %vm252, %v354, %v449
        %v617 = vsel %vm252, %v355, %v451
        %v618 = vsel %vm252, %v356, %v453
        %v619 = vsel %vm252, %v357, %v455
        %v620 = vsel %vm252, %v358, %v457
        %v621 = vsel %vm252, %v359, %v459
        %vm622 = vcmask 130048
        %v623 = vsel %vm622, %v590, %v495
        %v624 = vsel %vm622, %v591, %v497
        %v625 = vsel %vm622, %v592, %v499
        %v626 = vsel %vm622, %v593, %v501
        %v627 = vsel %vm622, %v594, %v503
        %v628 = vsel %vm622, %v595, %v505
        %v629 = vsel %vm622, %v596, %v507
        %v630 = vsel %vm622, %v597, %v509
        %v631 = vsel %vm622, %v598, %v511
        %v632 = vsel %vm622, %v599, %v513
        %v633 = vsel %vm622, %v600, %v515
        %v634 = vsel %vm622, %v601, %v517
        %v635 = vsel %vm622, %v602, %v519
        %v636 = vsel %vm622, %v603, %v521
        %v637 = vsel %vm622, %v604, %v523
        %v638 = vsel %vm622, %v605, %v525
        %v639 = vsel %vm622, %v606, %v527
        %v640 = vsel %vm622, %v607, %v529
        %v641 = vsel %vm622, %v608, %v531
        %v642 = vsel %vm622, %v609, %v533
        %v643 = vsel %vm622, %v610, %v535
        %v644 = vsel %vm622, %v611, %v537
        %v645 = vsel %vm622, %v612, %v539
        %v646 = vsel %vm622, %v613, %v541
        %v647 = vsel %vm622, %v614, %v543
        %v648 = vsel %vm622, %v615, %v545
        %v649 = vsel %vm622, %v616, %v547
        %v650 = vsel %vm622, %v617, %v549
        %v651 = vsel %vm622, %v618, %v551
        %v652 = vsel %vm622, %v619, %v553
        %v653 = vsel %vm622, %v620, %v555
        %v654 = vsel %vm622, %v621, %v557
        %v655 = vpack.c.bf16 %v624, %v623
        %v656 = vpack.c.bf16 %v626, %v625
        %v657 = vpack.c.bf16 %v628, %v627
        %v658 = vpack.c.bf16 %v630, %v629
        %v659 = vpack.c.bf16 %v632, %v631
        %v660 = vpack.c.bf16 %v634, %v633
        %v661 = vpack.c.bf16 %v636, %v635
        %v662 = vpack.c.bf16 %v638, %v637
        %v663 = vpack.c.bf16 %v640, %v639
        %v664 = vpack.c.bf16 %v642, %v641
        %v665 = vpack.c.bf16 %v644, %v643
        %v666 = vpack.c.bf16 %v646, %v645
        %v667 = vpack.c.bf16 %v648, %v647
        %v668 = vpack.c.bf16 %v650, %v649
        %v669 = vpack.c.bf16 %v652, %v651
        %v670 = vpack.c.bf16 %v654, %v653
        %v671 = vld [vmem:[%s1] sm:$0xf]
        %v672 = vld [vmem:[%s1 + $0x4] sm:$0xf]
        %v673 = vld [vmem:[%s1 + $0x8] sm:$0xf]
        %v677 = vunpack.c.l.b16 %v671
        %v678 = vunpack.c.l.b16 %v672
        %v679 = vunpack.c.l.b16 %v673
        %v680 = vpack.c.b16 %v678, %v677
        %v681 = vpack.c.b16 %v679, %v679
        %vm683 = vcmask 195584
        %v685 = vsel %vm683, %v655, 0
        %v688 = vsel %vm683, %v656, 0
        %v691 = vsel %vm683, %v657, 0
        %v694 = vsel %vm683, %v658, 0
        %v697 = vsel %vm683, %v659, 0
        %v700 = vsel %vm683, %v660, 0
        %v703 = vsel %vm683, %v661, 0
        %v706 = vsel %vm683, %v662, 0
        %v709 = vsel %vm683, %v663, 0
        %v712 = vsel %vm683, %v664, 0
        %v715 = vsel %vm683, %v665, 0
        %v718 = vsel %vm683, %v666, 0
        %v721 = vsel %vm683, %v667, 0
        %v724 = vsel %vm683, %v668, 0
        %v727 = vsel %vm683, %v669, 0
        %v730 = vsel %vm683, %v670, 0
        %vm732 = vcmask 1043456
        %v734 = vsel %vm732, %v681, 0
        %736 = vmatprep.subr.bf16.mxu0 0
        %737 = vmatpush1.bf16.msra.mxu0 %v680
        %738 = vmatprep.subr.bf16.mxu0 0
        %739 = vmatpush1.bf16.msra.mxu0 %v734
        %740 = vmatprep.subr.bf16.mxu0 0
        %741 = vmatpush1.bf16.msra.mxu0 0
        %742 = vmatprep.subr.bf16.mxu0 0
        %743 = vmatpush1.bf16.msra.mxu0 0
        %744 = vmatprep.subr.bf16.mxu0 0
        %745 = vmatpush1.bf16.msra.mxu0 0
        %746 = vmatprep.subr.bf16.mxu0 0
        %747 = vmatpush1.bf16.msra.mxu0 0
        %748 = vmatprep.subr.bf16.mxu0 0
        %749 = vmatpush1.bf16.msra.mxu0 0
        %750 = vmatprep.subr.bf16.mxu0 0
        %751 = vmatpush1.bf16.msra.mxu0 0
        %752 = vmatprep.subr.bf16.mxu0 0
        %753 = vmatpush1.bf16.msra.mxu0 0
        %754 = vmatprep.subr.bf16.mxu0 0
        %755 = vmatpush1.bf16.msra.mxu0 0
        %756 = vmatprep.subr.bf16.mxu0 0
        %757 = vmatpush1.bf16.msra.mxu0 0
        %758 = vmatprep.subr.bf16.mxu0 0
        %759 = vmatpush1.bf16.msra.mxu0 0
        %760 = vmatprep.subr.bf16.mxu0 0
        %761 = vmatpush1.bf16.msra.mxu0 0
        %762 = vmatprep.subr.bf16.mxu0 0
        %763 = vmatpush1.bf16.msra.mxu0 0
        %764 = vmatprep.subr.bf16.mxu0 0
        %765 = vmatpush1.bf16.msra.mxu0 0
        %766 = vmatprep.subr.bf16.mxu0 0
        %767 = vmatpush1.bf16.msra.mxu0 0
        %768 = vmatprep.mubr.bf16.mxu0 0
        %769 = vmatmul.mubr.bf16.gmra.mrb[0].mxu0 %v685
        %v770 = vpop.f32.mrb[0].mxu0
        %v771 = vadd.f32 0.0, %v770
        %v772 = vpop.f32.mrb[0].mxu0
        %v773 = vpop.f32.mrb[0].mxu0
        %v774 = vadd.f32 0.0, %v773
        %v775 = vpop.f32.mrb[0].mxu0
        %776 = vmatprep.mubr.bf16.mxu0 0
        %777 = vmatmul.mubr.bf16.gmra.mrb[0].mxu0 %v688
        %v778 = vpop.f32.mrb[0].mxu0
        %v779 = vadd.f32 0.0, %v778
        %v780 = vpop.f32.mrb[0].mxu0
        %v781 = vpop.f32.mrb[0].mxu0
        %v782 = vadd.f32 0.0, %v781
        %v783 = vpop.f32.mrb[0].mxu0
        %784 = vmatprep.mubr.bf16.mxu0 0
        %785 = vmatmul.mubr.bf16.gmra.mrb[0].mxu0 %v691
        %v786 = vpop.f32.mrb[0].mxu0
        %v787 = vadd.f32 0.0, %v786
        %v788 = vpop.f32.mrb[0].mxu0
        %v789 = vpop.f32.mrb[0].mxu0
        %v790 = vadd.f32 0.0, %v789
        %v791 = vpop.f32.mrb[0].mxu0
        %792 = vmatprep.mubr.bf16.mxu0 0
        %793 = vmatmul.mubr.bf16.gmra.mrb[0].mxu0 %v694
        %v794 = vpop.f32.mrb[0].mxu0
        %v795 = vadd.f32 0.0, %v794
        %v796 = vpop.f32.mrb[0].mxu0
        %v797 = vpop.f32.mrb[0].mxu0
        %v798 = vadd.f32 0.0, %v797
        %v799 = vpop.f32.mrb[0].mxu0
        %800 = vmatprep.mubr.bf16.mxu0 0
        %801 = vmatmul.mubr.bf16.gmra.mrb[0].mxu0 %v697
        %v802 = vpop.f32.mrb[0].mxu0
        %v803 = vadd.f32 0.0, %v802
        %v804 = vpop.f32.mrb[0].mxu0
        %v805 = vpop.f32.mrb[0].mxu0
        %v806 = vadd.f32 0.0, %v805
        %v807 = vpop.f32.mrb[0].mxu0
        %808 = vmatprep.mubr.bf16.mxu0 0
        %809 = vmatmul.mubr.bf16.gmra.mrb[0].mxu0 %v700
        %v810 = vpop.f32.mrb[0].mxu0
        %v811 = vadd.f32 0.0, %v810
        %v812 = vpop.f32.mrb[0].mxu0
        %v813 = vpop.f32.mrb[0].mxu0
        %v814 = vadd.f32 0.0, %v813
        %v815 = vpop.f32.mrb[0].mxu0
        %816 = vmatprep.mubr.bf16.mxu0 0
        %817 = vmatmul.mubr.bf16.gmra.mrb[0].mxu0 %v703
        %v818 = vpop.f32.mrb[0].mxu0
        %v819 = vadd.f32 0.0, %v818
        %v820 = vpop.f32.mrb[0].mxu0
        %v821 = vpop.f32.mrb[0].mxu0
        %v822 = vadd.f32 0.0, %v821
        %v823 = vpop.f32.mrb[0].mxu0
        %824 = vmatprep.mubr.bf16.mxu0 0
        %825 = vmatmul.mubr.bf16.gmra.mrb[0].mxu0 %v706
        %v826 = vpop.f32.mrb[0].mxu0
        %v827 = vadd.f32 0.0, %v826
        %v828 = vpop.f32.mrb[0].mxu0
        %v829 = vpop.f32.mrb[0].mxu0
        %v830 = vadd.f32 0.0, %v829
        %v831 = vpop.f32.mrb[0].mxu0
        %832 = vmatprep.mubr.bf16.mxu0 0
        %833 = vmatmul.mubr.bf16.gmra.mrb[0].mxu0 %v709
        %v834 = vpop.f32.mrb[0].mxu0
        %v835 = vadd.f32 0.0, %v834
        %v836 = vpop.f32.mrb[0].mxu0
        %v837 = vpop.f32.mrb[0].mxu0
        %v838 = vadd.f32 0.0, %v837
        %v839 = vpop.f32.mrb[0].mxu0
        %840 = vmatprep.mubr.bf16.mxu0 0
        %841 = vmatmul.mubr.bf16.gmra.mrb[0].mxu0 %v712
        %v842 = vpop.f32.mrb[0].mxu0
        %v843 = vadd.f32 0.0, %v842
        %v844 = vpop.f32.mrb[0].mxu0
        %v845 = vpop.f32.mrb[0].mxu0
        %v846 = vadd.f32 0.0, %v845
        %v847 = vpop.f32.mrb[0].mxu0
        %848 = vmatprep.mubr.bf16.mxu0 0
        %849 = vmatmul.mubr.bf16.gmra.mrb[0].mxu0 %v715
        %v850 = vpop.f32.mrb[0].mxu0
        %v851 = vadd.f32 0.0, %v850
        %v852 = vpop.f32.mrb[0].mxu0
        %v853 = vpop.f32.mrb[0].mxu0
        %v854 = vadd.f32 0.0, %v853
        %v855 = vpop.f32.mrb[0].mxu0
        %856 = vmatprep.mubr.bf16.mxu0 0
        %857 = vmatmul.mubr.bf16.gmra.mrb[0].mxu0 %v718
        %v858 = vpop.f32.mrb[0].mxu0
        %v859 = vadd.f32 0.0, %v858
        %v860 = vpop.f32.mrb[0].mxu0
        %v861 = vpop.f32.mrb[0].mxu0
        %v862 = vadd.f32 0.0, %v861
        %v863 = vpop.f32.mrb[0].mxu0
        %864 = vmatprep.mubr.bf16.mxu0 0
        %865 = vmatmul.mubr.bf16.gmra.mrb[0].mxu0 %v721
        %v866 = vpop.f32.mrb[0].mxu0
        %v867 = vadd.f32 0.0, %v866
        %v868 = vpop.f32.mrb[0].mxu0
        %v869 = vpop.f32.mrb[0].mxu0
        %v870 = vadd.f32 0.0, %v869
        %v871 = vpop.f32.mrb[0].mxu0
        %872 = vmatprep.mubr.bf16.mxu0 0
        %873 = vmatmul.mubr.bf16.gmra.mrb[0].mxu0 %v724
        %v874 = vpop.f32.mrb[0].mxu0
        %v875 = vadd.f32 0.0, %v874
        %v876 = vpop.f32.mrb[0].mxu0
        %v877 = vpop.f32.mrb[0].mxu0
        %v878 = vadd.f32 0.0, %v877
        %v879 = vpop.f32.mrb[0].mxu0
        %880 = vmatprep.mubr.bf16.mxu0 0
        %881 = vmatmul.mubr.bf16.gmra.mrb[0].mxu0 %v727
        %v882 = vpop.f32.mrb[0].mxu0
        %v883 = vadd.f32 0.0, %v882
        %v884 = vpop.f32.mrb[0].mxu0
        %v885 = vpop.f32.mrb[0].mxu0
        %v886 = vadd.f32 0.0, %v885
        %v887 = vpop.f32.mrb[0].mxu0
        %888 = vmatprep.mubr.bf16.mxu0 0
        %889 = vmatmul.mubr.bf16.gmra.mrb[0].mxu0 %v730
        %v890 = vpop.f32.mrb[0].mxu0
        %v891 = vadd.f32 0.0, %v890
        %v892 = vpop.f32.mrb[0].mxu0
        %v893 = vpop.f32.mrb[0].mxu0
        %v894 = vadd.f32 0.0, %v893
        %v895 = vpop.f32.mrb[0].mxu0
        %896 = vdwg.mxu0
        %v898 = vlaneseq
        %v899 = vshrl.u32 %v898, 7
        %v900 = vsub.s32 0, %v899
        %v901 = vrot.slane %v327, %v900
        %v903 = vadd.f32 %v901, %v771
        %v904 = vadd.f32 %v901, %v774
        %v905 = vadd.f32 %v901, %v779
        %v906 = vadd.f32 %v901, %v782
        %v907 = vadd.f32 %v901, %v787
        %v908 = vadd.f32 %v901, %v790
        %v909 = vadd.f32 %v901, %v795
        %v910 = vadd.f32 %v901, %v798
        %v911 = vadd.f32 %v901, %v803
        %v912 = vadd.f32 %v901, %v806
        %v913 = vadd.f32 %v901, %v811
        %v914 = vadd.f32 %v901, %v814
        %v915 = vadd.f32 %v901, %v819
        %v916 = vadd.f32 %v901, %v822
        %v917 = vadd.f32 %v901, %v827
        %v918 = vadd.f32 %v901, %v830
        %v919 = vadd.f32 %v901, %v835
        %v920 = vadd.f32 %v901, %v838
        %v921 = vadd.f32 %v901, %v843
        %v922 = vadd.f32 %v901, %v846
        %v923 = vadd.f32 %v901, %v851
        %v924 = vadd.f32 %v901, %v854
        %v925 = vadd.f32 %v901, %v859
        %v926 = vadd.f32 %v901, %v862
        %v927 = vadd.f32 %v901, %v867
        %v928 = vadd.f32 %v901, %v870
        %v929 = vadd.f32 %v901, %v875
        %v930 = vadd.f32 %v901, %v878
        %v931 = vadd.f32 %v901, %v883
        %v932 = vadd.f32 %v901, %v886
        %v933 = vadd.f32 %v901, %v891
        %v934 = vadd.f32 %v901, %v894
        %v935 = vld [vmem:[#allocation2 + $0x8] sm:$0xff]
        %v936 = vld [vmem:[#allocation2 + $0x10] sm:$0xff]
        %v937 = vld [vmem:[#allocation2 + $0x28] sm:$0xff]
        %v938 = vld [vmem:[#allocation2 + $0x30] sm:$0xff]
        %v939 = vld [vmem:[#allocation2 + $0x48] sm:$0xff]
        %v940 = vld [vmem:[#allocation2 + $0x50] sm:$0xff]
        %v941 = vld [vmem:[#allocation2 + $0x68] sm:$0xff]
        %v942 = vld [vmem:[#allocation2 + $0x70] sm:$0xff]
        %v943 = vld [vmem:[#allocation2 + $0x88] sm:$0xff]
        %v944 = vld [vmem:[#allocation2 + $0x90] sm:$0xff]
        %v945 = vld [vmem:[#allocation2 + $0xa8] sm:$0xff]
        %v946 = vld [vmem:[#allocation2 + $0xb0] sm:$0xff]
        %v947 = vld [vmem:[#allocation2 + $0xc8] sm:$0xff]
        %v948 = vld [vmem:[#allocation2 + $0xd0] sm:$0xff]
        %v949 = vld [vmem:[#allocation2 + $0xe8] sm:$0xff]
        %v950 = vld [vmem:[#allocation2 + $0xf0] sm:$0xff]
        %v951 = vld [vmem:[#allocation2 + $0x108] sm:$0xff]
        %v952 = vld [vmem:[#allocation2 + $0x110] sm:$0xff]
        %v953 = vld [vmem:[#allocation2 + $0x128] sm:$0xff]
        %v954 = vld [vmem:[#allocation2 + $0x130] sm:$0xff]
        %v955 = vld [vmem:[#allocation2 + $0x148] sm:$0xff]
        %v956 = vld [vmem:[#allocation2 + $0x150] sm:$0xff]
        %v957 = vld [vmem:[#allocation2 + $0x168] sm:$0xff]
        %v958 = vld [vmem:[#allocation2 + $0x170] sm:$0xff]
        %v959 = vld [vmem:[#allocation2 + $0x188] sm:$0xff]
        %v960 = vld [vmem:[#allocation2 + $0x190] sm:$0xff]
        %v961 = vld [vmem:[#allocation2 + $0x1a8] sm:$0xff]
        %v962 = vld [vmem:[#allocation2 + $0x1b0] sm:$0xff]
        %v963 = vld [vmem:[#allocation2 + $0x1c8] sm:$0xff]
        %v964 = vld [vmem:[#allocation2 + $0x1d0] sm:$0xff]
        %v965 = vld [vmem:[#allocation2 + $0x1e8] sm:$0xff]
        %v966 = vld [vmem:[#allocation2 + $0x1f0] sm:$0xff]
        %v967 = vld [vmem:[#allocation2 + $0x208] sm:$0xff]
        %v968 = vld [vmem:[#allocation2 + $0x210] sm:$0xff]
        %v969 = vld [vmem:[#allocation2 + $0x228] sm:$0xff]
        %v970 = vld [vmem:[#allocation2 + $0x230] sm:$0xff]
        %1003 = vrot.lane.b32.xlu0 %v937, 8
        %v1004 = vpop.permute.xlu0 %1003
        %1005 = vrot.lane.b32.xlu0 %v938, 8
        %v1006 = vpop.permute.xlu0 %1005
        %1007 = vrot.lane.b32.xlu0 %v939, 8
        %v1008 = vpop.permute.xlu0 %1007
        %1009 = vrot.lane.b32.xlu0 %v940, 8
        %v1010 = vpop.permute.xlu0 %1009
        %1011 = vrot.lane.b32.xlu0 %v941, 8
        %v1012 = vpop.permute.xlu0 %1011
        %1013 = vrot.lane.b32.xlu0 %v942, 8
        %v1014 = vpop.permute.xlu0 %1013
        %1015 = vrot.lane.b32.xlu0 %v943, 8
        %v1016 = vpop.permute.xlu0 %1015
        %1017 = vrot.lane.b32.xlu0 %v944, 8
        %v1018 = vpop.permute.xlu0 %1017
        %1019 = vrot.lane.b32.xlu0 %v945, 8
        %v1020 = vpop.permute.xlu0 %1019
        %1021 = vrot.lane.b32.xlu0 %v946, 8
        %v1022 = vpop.permute.xlu0 %1021
        %1023 = vrot.lane.b32.xlu0 %v947, 8
        %v1024 = vpop.permute.xlu0 %1023
        %1025 = vrot.lane.b32.xlu0 %v948, 8
        %v1026 = vpop.permute.xlu0 %1025
        %1027 = vrot.lane.b32.xlu0 %v949, 8
        %v1028 = vpop.permute.xlu0 %1027
        %1029 = vrot.lane.b32.xlu0 %v950, 8
        %v1030 = vpop.permute.xlu0 %1029
        %1031 = vrot.lane.b32.xlu0 %v951, 8
        %v1032 = vpop.permute.xlu0 %1031
        %1033 = vrot.lane.b32.xlu0 %v952, 8
        %v1034 = vpop.permute.xlu0 %1033
        %1035 = vrot.lane.b32.xlu0 %v953, 8
        %v1036 = vpop.permute.xlu0 %1035
        %1037 = vrot.lane.b32.xlu0 %v954, 8
        %v1038 = vpop.permute.xlu0 %1037
        %1039 = vrot.lane.b32.xlu0 %v955, 8
        %v1040 = vpop.permute.xlu0 %1039
        %1041 = vrot.lane.b32.xlu0 %v956, 8
        %v1042 = vpop.permute.xlu0 %1041
        %1043 = vrot.lane.b32.xlu0 %v957, 8
        %v1044 = vpop.permute.xlu0 %1043
        %1045 = vrot.lane.b32.xlu0 %v958, 8
        %v1046 = vpop.permute.xlu0 %1045
        %1047 = vrot.lane.b32.xlu0 %v959, 8
        %v1048 = vpop.permute.xlu0 %1047
        %1049 = vrot.lane.b32.xlu0 %v960, 8
        %v1050 = vpop.permute.xlu0 %1049
        %1051 = vrot.lane.b32.xlu0 %v961, 8
        %v1052 = vpop.permute.xlu0 %1051
        %1053 = vrot.lane.b32.xlu0 %v962, 8
        %v1054 = vpop.permute.xlu0 %1053
        %1055 = vrot.lane.b32.xlu0 %v963, 8
        %v1056 = vpop.permute.xlu0 %1055
        %1057 = vrot.lane.b32.xlu0 %v964, 8
        %v1058 = vpop.permute.xlu0 %1057
        %1059 = vrot.lane.b32.xlu0 %v965, 8
        %v1060 = vpop.permute.xlu0 %1059
        %1061 = vrot.lane.b32.xlu0 %v966, 8
        %v1062 = vpop.permute.xlu0 %1061
        %1063 = vrot.lane.b32.xlu0 %v967, 8
        %v1064 = vpop.permute.xlu0 %1063
        %1065 = vrot.lane.b32.xlu0 %v968, 8
        %v1066 = vpop.permute.xlu0 %1065
        %1101 = vrot.lane.b32.xlu0 %v939, 16
        %v1102 = vpop.permute.xlu0 %1101
        %1103 = vrot.lane.b32.xlu0 %v940, 16
        %v1104 = vpop.permute.xlu0 %1103
        %1105 = vrot.lane.b32.xlu0 %v941, 16
        %v1106 = vpop.permute.xlu0 %1105
        %1107 = vrot.lane.b32.xlu0 %v942, 16
        %v1108 = vpop.permute.xlu0 %1107
        %1109 = vrot.lane.b32.xlu0 %v943, 16
        %v1110 = vpop.permute.xlu0 %1109
        %1111 = vrot.lane.b32.xlu0 %v944, 16
        %v1112 = vpop.permute.xlu0 %1111
        %1113 = vrot.lane.b32.xlu0 %v945, 16
        %v1114 = vpop.permute.xlu0 %1113
        %1115 = vrot.lane.b32.xlu0 %v946, 16
        %v1116 = vpop.permute.xlu0 %1115
        %1117 = vrot.lane.b32.xlu0 %v947, 16
        %v1118 = vpop.permute.xlu0 %1117
        %1119 = vrot.lane.b32.xlu0 %v948, 16
        %v1120 = vpop.permute.xlu0 %1119
        %1121 = vrot.lane.b32.xlu0 %v949, 16
        %v1122 = vpop.permute.xlu0 %1121
        %1123 = vrot.lane.b32.xlu0 %v950, 16
        %v1124 = vpop.permute.xlu0 %1123
        %1125 = vrot.lane.b32.xlu0 %v951, 16
        %v1126 = vpop.permute.xlu0 %1125
        %1127 = vrot.lane.b32.xlu0 %v952, 16
        %v1128 = vpop.permute.xlu0 %1127
        %1129 = vrot.lane.b32.xlu0 %v953, 16
        %v1130 = vpop.permute.xlu0 %1129
        %1131 = vrot.lane.b32.xlu0 %v954, 16
        %v1132 = vpop.permute.xlu0 %1131
        %1133 = vrot.lane.b32.xlu0 %v955, 16
        %v1134 = vpop.permute.xlu0 %1133
        %1135 = vrot.lane.b32.xlu0 %v956, 16
        %v1136 = vpop.permute.xlu0 %1135
        %1137 = vrot.lane.b32.xlu0 %v957, 16
        %v1138 = vpop.permute.xlu0 %1137
        %1139 = vrot.lane.b32.xlu0 %v958, 16
        %v1140 = vpop.permute.xlu0 %1139
        %1141 = vrot.lane.b32.xlu0 %v959, 16
        %v1142 = vpop.permute.xlu0 %1141
        %1143 = vrot.lane.b32.xlu0 %v960, 16
        %v1144 = vpop.permute.xlu0 %1143
        %1145 = vrot.lane.b32.xlu0 %v961, 16
        %v1146 = vpop.permute.xlu0 %1145
        %1147 = vrot.lane.b32.xlu0 %v962, 16
        %v1148 = vpop.permute.xlu0 %1147
        %1149 = vrot.lane.b32.xlu0 %v963, 16
        %v1150 = vpop.permute.xlu0 %1149
        %1151 = vrot.lane.b32.xlu0 %v964, 16
        %v1152 = vpop.permute.xlu0 %1151
        %1153 = vrot.lane.b32.xlu0 %v965, 16
        %v1154 = vpop.permute.xlu0 %1153
        %1155 = vrot.lane.b32.xlu0 %v966, 16
        %v1156 = vpop.permute.xlu0 %1155
        %1157 = vrot.lane.b32.xlu0 %v967, 16
        %v1158 = vpop.permute.xlu0 %1157
        %1159 = vrot.lane.b32.xlu0 %v968, 16
        %v1160 = vpop.permute.xlu0 %1159
        %1161 = vrot.lane.b32.xlu0 %v969, 16
        %v1162 = vpop.permute.xlu0 %1161
        %1163 = vrot.lane.b32.xlu0 %v970, 16
        %v1164 = vpop.permute.xlu0 %1163
        %v1197 = vsel %vm252, %v935, %v1004
        %v1198 = vsel %vm252, %v936, %v1006
        %v1199 = vsel %vm252, %v937, %v1008
        %v1200 = vsel %vm252, %v938, %v1010
        %v1201 = vsel %vm252, %v939, %v1012
        %v1202 = vsel %vm252, %v940, %v1014
        %v1203 = vsel %vm252, %v941, %v1016
        %v1204 = vsel %vm252, %v942, %v1018
        %v1205 = vsel %vm252, %v943, %v1020
        %v1206 = vsel %vm252, %v944, %v1022
        %v1207 = vsel %vm252, %v945, %v1024
        %v1208 = vsel %vm252, %v946, %v1026
        %v1209 = vsel %vm252, %v947, %v1028
        %v1210 = vsel %vm252, %v948, %v1030
        %v1211 = vsel %vm252, %v949, %v1032
        %v1212 = vsel %vm252, %v950, %v1034
        %v1213 = vsel %vm252, %v951, %v1036
        %v1214 = vsel %vm252, %v952, %v1038
        %v1215 = vsel %vm252, %v953, %v1040
        %v1216 = vsel %vm252, %v954, %v1042
        %v1217 = vsel %vm252, %v955, %v1044
        %v1218 = vsel %vm252, %v956, %v1046
        %v1219 = vsel %vm252, %v957, %v1048
        %v1220 = vsel %vm252, %v958, %v1050
        %v1221 = vsel %vm252, %v959, %v1052
        %v1222 = vsel %vm252, %v960, %v1054
        %v1223 = vsel %vm252, %v961, %v1056
        %v1224 = vsel %vm252, %v962, %v1058
        %v1225 = vsel %vm252, %v963, %v1060
        %v1226 = vsel %vm252, %v964, %v1062
        %v1227 = vsel %vm252, %v965, %v1064
        %v1228 = vsel %vm252, %v966, %v1066
        %v1229 = vsel %vm622, %v1197, %v1102
        %v1230 = vsel %vm622, %v1198, %v1104
        %v1231 = vsel %vm622, %v1199, %v1106
        %v1232 = vsel %vm622, %v1200, %v1108
        %v1233 = vsel %vm622, %v1201, %v1110
        %v1234 = vsel %vm622, %v1202, %v1112
        %v1235 = vsel %vm622, %v1203, %v1114
        %v1236 = vsel %vm622, %v1204, %v1116
        %v1237 = vsel %vm622, %v1205, %v1118
        %v1238 = vsel %vm622, %v1206, %v1120
        %v1239 = vsel %vm622, %v1207, %v1122
        %v1240 = vsel %vm622, %v1208, %v1124
        %v1241 = vsel %vm622, %v1209, %v1126
        %v1242 = vsel %vm622, %v1210, %v1128
        %v1243 = vsel %vm622, %v1211, %v1130
        %v1244 = vsel %vm622, %v1212, %v1132
        %v1245 = vsel %vm622, %v1213, %v1134
        %v1246 = vsel %vm622, %v1214, %v1136
        %v1247 = vsel %vm622, %v1215, %v1138
        %v1248 = vsel %vm622, %v1216, %v1140
        %v1249 = vsel %vm622, %v1217, %v1142
        %v1250 = vsel %vm622, %v1218, %v1144
        %v1251 = vsel %vm622, %v1219, %v1146
        %v1252 = vsel %vm622, %v1220, %v1148
        %v1253 = vsel %vm622, %v1221, %v1150
        %v1254 = vsel %vm622, %v1222, %v1152
        %v1255 = vsel %vm622, %v1223, %v1154
        %v1256 = vsel %vm622, %v1224, %v1156
        %v1257 = vsel %vm622, %v1225, %v1158
        %v1258 = vsel %vm622, %v1226, %v1160
        %v1259 = vsel %vm622, %v1227, %v1162
        %v1260 = vsel %vm622, %v1228, %v1164
        %v1261 = vpack.c.bf16 %v1230, %v1229
        %v1262 = vpack.c.bf16 %v1232, %v1231
        %v1263 = vpack.c.bf16 %v1234, %v1233
        %v1264 = vpack.c.bf16 %v1236, %v1235
        %v1265 = vpack.c.bf16 %v1238, %v1237
        %v1266 = vpack.c.bf16 %v1240, %v1239
        %v1267 = vpack.c.bf16 %v1242, %v1241
        %v1268 = vpack.c.bf16 %v1244, %v1243
        %v1269 = vpack.c.bf16 %v1246, %v1245
        %v1270 = vpack.c.bf16 %v1248, %v1247
        %v1271 = vpack.c.bf16 %v1250, %v1249
        %v1272 = vpack.c.bf16 %v1252, %v1251
        %v1273 = vpack.c.bf16 %v1254, %v1253
        %v1274 = vpack.c.bf16 %v1256, %v1255
        %v1275 = vpack.c.bf16 %v1258, %v1257
        %v1276 = vpack.c.bf16 %v1260, %v1259
        %s1277 = scalar_lea.vmem %s1, 12
        %v1278 = vld [vmem:[%s1277] sm:$0xf]
        %v1279 = vld [vmem:[%s1277 + $0x4] sm:$0xf]
        %v1280 = vld [vmem:[%s1277 + $0x8] sm:$0xf]
        %v1284 = vunpack.c.l.b16 %v1278
        %v1285 = vunpack.c.l.b16 %v1279
        %v1286 = vunpack.c.l.b16 %v1280
        %v1287 = vpack.c.b16 %v1285, %v1284
        %v1288 = vpack.c.b16 %v1286, %v1286
        %v1291 = vsel %vm683, %v1261, 0
        %v1294 = vsel %vm683, %v1262, 0
        %v1297 = vsel %vm683, %v1263, 0
        %v1300 = vsel %vm683, %v1264, 0
        %v1303 = vsel %vm683, %v1265, 0
        %v1306 = vsel %vm683, %v1266, 0
        %v1309 = vsel %vm683, %v1267, 0
        %v1312 = vsel %vm683, %v1268, 0
        %v1315 = vsel %vm683, %v1269, 0
        %v1318 = vsel %vm683, %v1270, 0
        %v1321 = vsel %vm683, %v1271, 0
        %v1324 = vsel %vm683, %v1272, 0
        %v1327 = vsel %vm683, %v1273, 0
        %v1330 = vsel %vm683, %v1274, 0
        %v1333 = vsel %vm683, %v1275, 0
        %v1336 = vsel %vm683, %v1276, 0
        %v1339 = vsel %vm732, %v1288, 0
        %1341 = vmatprep.subr.bf16.mxu0 0
        %1342 = vmatpush1.bf16.msra.mxu0 %v1287
        %1343 = vmatprep.subr.bf16.mxu0 0
        %1344 = vmatpush1.bf16.msra.mxu0 %v1339
        %1345 = vmatprep.subr.bf16.mxu0 0
        %1346 = vmatpush1.bf16.msra.mxu0 0
        %1347 = vmatprep.subr.bf16.mxu0 0
        %1348 = vmatpush1.bf16.msra.mxu0 0
        %1349 = vmatprep.subr.bf16.mxu0 0
        %1350 = vmatpush1.bf16.msra.mxu0 0
        %1351 = vmatprep.subr.bf16.mxu0 0
        %1352 = vmatpush1.bf16.msra.mxu0 0
        %1353 = vmatprep.subr.bf16.mxu0 0
        %1354 = vmatpush1.bf16.msra.mxu0 0
        %1355 = vmatprep.subr.bf16.mxu0 0
        %1356 = vmatpush1.bf16.msra.mxu0 0
        %1357 = vmatprep.subr.bf16.mxu0 0
        %1358 = vmatpush1.bf16.msra.mxu0 0
        %1359 = vmatprep.subr.bf16.mxu0 0
        %1360 = vmatpush1.bf16.msra.mxu0 0
        %1361 = vmatprep.subr.bf16.mxu0 0
        %1362 = vmatpush1.bf16.msra.mxu0 0
        %1363 = vmatprep.subr.bf16.mxu0 0
        %1364 = vmatpush1.bf16.msra.mxu0 0
        %1365 = vmatprep.subr.bf16.mxu0 0
        %1366 = vmatpush1.bf16.msra.mxu0 0
        %1367 = vmatprep.subr.bf16.mxu0 0
        %1368 = vmatpush1.bf16.msra.mxu0 0
        %1369 = vmatprep.subr.bf16.mxu0 0
        %1370 = vmatpush1.bf16.msra.mxu0 0
        %1371 = vmatprep.subr.bf16.mxu0 0
        %1372 = vmatpush1.bf16.msra.mxu0 0
        %1373 = vmatprep.mubr.bf16.mxu0 0
        %1374 = vmatmul.mubr.bf16.gmra.mrb[0].mxu0 %v1291
        %v1375 = vpop.f32.mrb[0].mxu0
        %v1376 = vadd.f32 0.0, %v1375
        %v1377 = vpop.f32.mrb[0].mxu0
        %v1378 = vpop.f32.mrb[0].mxu0
        %v1379 = vadd.f32 0.0, %v1378
        %v1380 = vpop.f32.mrb[0].mxu0
        %1381 = vmatprep.mubr.bf16.mxu0 0
        %1382 = vmatmul.mubr.bf16.gmra.mrb[0].mxu0 %v1294
        %v1383 = vpop.f32.mrb[0].mxu0
        %v1384 = vadd.f32 0.0, %v1383
        %v1385 = vpop.f32.mrb[0].mxu0
        %v1386 = vpop.f32.mrb[0].mxu0
        %v1387 = vadd.f32 0.0, %v1386
        %v1388 = vpop.f32.mrb[0].mxu0
        %1389 = vmatprep.mubr.bf16.mxu0 0
        %1390 = vmatmul.mubr.bf16.gmra.mrb[0].mxu0 %v1297
        %v1391 = vpop.f32.mrb[0].mxu0
        %v1392 = vadd.f32 0.0, %v1391
        %v1393 = vpop.f32.mrb[0].mxu0
        %v1394 = vpop.f32.mrb[0].mxu0
        %v1395 = vadd.f32 0.0, %v1394
        %v1396 = vpop.f32.mrb[0].mxu0
        %1397 = vmatprep.mubr.bf16.mxu0 0
        %1398 = vmatmul.mubr.bf16.gmra.mrb[0].mxu0 %v1300
        %v1399 = vpop.f32.mrb[0].mxu0
        %v1400 = vadd.f32 0.0, %v1399
        %v1401 = vpop.f32.mrb[0].mxu0
        %v1402 = vpop.f32.mrb[0].mxu0
        %v1403 = vadd.f32 0.0, %v1402
        %v1404 = vpop.f32.mrb[0].mxu0
        %1405 = vmatprep.mubr.bf16.mxu0 0
        %1406 = vmatmul.mubr.bf16.gmra.mrb[0].mxu0 %v1303
        %v1407 = vpop.f32.mrb[0].mxu0
        %v1408 = vadd.f32 0.0, %v1407
        %v1409 = vpop.f32.mrb[0].mxu0
        %v1410 = vpop.f32.mrb[0].mxu0
        %v1411 = vadd.f32 0.0, %v1410
        %v1412 = vpop.f32.mrb[0].mxu0
        %1413 = vmatprep.mubr.bf16.mxu0 0
        %1414 = vmatmul.mubr.bf16.gmra.mrb[0].mxu0 %v1306
        %v1415 = vpop.f32.mrb[0].mxu0
        %v1416 = vadd.f32 0.0, %v1415
        %v1417 = vpop.f32.mrb[0].mxu0
        %v1418 = vpop.f32.mrb[0].mxu0
        %v1419 = vadd.f32 0.0, %v1418
        %v1420 = vpop.f32.mrb[0].mxu0
        %1421 = vmatprep.mubr.bf16.mxu0 0
        %1422 = vmatmul.mubr.bf16.gmra.mrb[0].mxu0 %v1309
        %v1423 = vpop.f32.mrb[0].mxu0
        %v1424 = vadd.f32 0.0, %v1423
        %v1425 = vpop.f32.mrb[0].mxu0
        %v1426 = vpop.f32.mrb[0].mxu0
        %v1427 = vadd.f32 0.0, %v1426
        %v1428 = vpop.f32.mrb[0].mxu0
        %1429 = vmatprep.mubr.bf16.mxu0 0
        %1430 = vmatmul.mubr.bf16.gmra.mrb[0].mxu0 %v1312
        %v1431 = vpop.f32.mrb[0].mxu0
        %v1432 = vadd.f32 0.0, %v1431
        %v1433 = vpop.f32.mrb[0].mxu0
        %v1434 = vpop.f32.mrb[0].mxu0
        %v1435 = vadd.f32 0.0, %v1434
        %v1436 = vpop.f32.mrb[0].mxu0
        %1437 = vmatprep.mubr.bf16.mxu0 0
        %1438 = vmatmul.mubr.bf16.gmra.mrb[0].mxu0 %v1315
        %v1439 = vpop.f32.mrb[0].mxu0
        %v1440 = vadd.f32 0.0, %v1439
        %v1441 = vpop.f32.mrb[0].mxu0
        %v1442 = vpop.f32.mrb[0].mxu0
        %v1443 = vadd.f32 0.0, %v1442
        %v1444 = vpop.f32.mrb[0].mxu0
        %1445 = vmatprep.mubr.bf16.mxu0 0
        %1446 = vmatmul.mubr.bf16.gmra.mrb[0].mxu0 %v1318
        %v1447 = vpop.f32.mrb[0].mxu0
        %v1448 = vadd.f32 0.0, %v1447
        %v1449 = vpop.f32.mrb[0].mxu0
        %v1450 = vpop.f32.mrb[0].mxu0
        %v1451 = vadd.f32 0.0, %v1450
        %v1452 = vpop.f32.mrb[0].mxu0
        %1453 = vmatprep.mubr.bf16.mxu0 0
        %1454 = vmatmul.mubr.bf16.gmra.mrb[0].mxu0 %v1321
        %v1455 = vpop.f32.mrb[0].mxu0
        %v1456 = vadd.f32 0.0, %v1455
        %v1457 = vpop.f32.mrb[0].mxu0
        %v1458 = vpop.f32.mrb[0].mxu0
        %v1459 = vadd.f32 0.0, %v1458
        %v1460 = vpop.f32.mrb[0].mxu0
        %1461 = vmatprep.mubr.bf16.mxu0 0
        %1462 = vmatmul.mubr.bf16.gmra.mrb[0].mxu0 %v1324
        %v1463 = vpop.f32.mrb[0].mxu0
        %v1464 = vadd.f32 0.0, %v1463
        %v1465 = vpop.f32.mrb[0].mxu0
        %v1466 = vpop.f32.mrb[0].mxu0
        %v1467 = vadd.f32 0.0, %v1466
        %v1468 = vpop.f32.mrb[0].mxu0
        %1469 = vmatprep.mubr.bf16.mxu0 0
        %1470 = vmatmul.mubr.bf16.gmra.mrb[0].mxu0 %v1327
        %v1471 = vpop.f32.mrb[0].mxu0
        %v1472 = vadd.f32 0.0, %v1471
        %v1473 = vpop.f32.mrb[0].mxu0
        %v1474 = vpop.f32.mrb[0].mxu0
        %v1475 = vadd.f32 0.0, %v1474
        %v1476 = vpop.f32.mrb[0].mxu0
        %1477 = vmatprep.mubr.bf16.mxu0 0
        %1478 = vmatmul.mubr.bf16.gmra.mrb[0].mxu0 %v1330
        %v1479 = vpop.f32.mrb[0].mxu0
        %v1480 = vadd.f32 0.0, %v1479
        %v1481 = vpop.f32.mrb[0].mxu0
        %v1482 = vpop.f32.mrb[0].mxu0
        %v1483 = vadd.f32 0.0, %v1482
        %v1484 = vpop.f32.mrb[0].mxu0
        %1485 = vmatprep.mubr.bf16.mxu0 0
        %1486 = vmatmul.mubr.bf16.gmra.mrb[0].mxu0 %v1333
        %v1487 = vpop.f32.mrb[0].mxu0
        %v1488 = vadd.f32 0.0, %v1487
        %v1489 = vpop.f32.mrb[0].mxu0
        %v1490 = vpop.f32.mrb[0].mxu0
        %v1491 = vadd.f32 0.0, %v1490
        %v1492 = vpop.f32.mrb[0].mxu0
        %1493 = vmatprep.mubr.bf16.mxu0 0
        %1494 = vmatmul.mubr.bf16.gmra.mrb[0].mxu0 %v1336
        %v1495 = vpop.f32.mrb[0].mxu0
        %v1496 = vadd.f32 0.0, %v1495
        %v1497 = vpop.f32.mrb[0].mxu0
        %v1498 = vpop.f32.mrb[0].mxu0
        %v1499 = vadd.f32 0.0, %v1498
        %v1500 = vpop.f32.mrb[0].mxu0
        %1501 = vdwg.mxu0
        %v1502 = vadd.f32 %v903, %v1376
        %v1503 = vadd.f32 %v904, %v1379
        %v1504 = vadd.f32 %v905, %v1384
        %v1505 = vadd.f32 %v906, %v1387
        %v1506 = vadd.f32 %v907, %v1392
        %v1507 = vadd.f32 %v908, %v1395
        %v1508 = vadd.f32 %v909, %v1400
        %v1509 = vadd.f32 %v910, %v1403
        %v1510 = vadd.f32 %v911, %v1408
        %v1511 = vadd.f32 %v912, %v1411
        %v1512 = vadd.f32 %v913, %v1416
        %v1513 = vadd.f32 %v914, %v1419
        %v1514 = vadd.f32 %v915, %v1424
        %v1515 = vadd.f32 %v916, %v1427
        %v1516 = vadd.f32 %v917, %v1432
        %v1517 = vadd.f32 %v918, %v1435
        %v1518 = vadd.f32 %v919, %v1440
        %v1519 = vadd.f32 %v920, %v1443
        %v1520 = vadd.f32 %v921, %v1448
        %v1521 = vadd.f32 %v922, %v1451
        %v1522 = vadd.f32 %v923, %v1456
        %v1523 = vadd.f32 %v924, %v1459
        %v1524 = vadd.f32 %v925, %v1464
        %v1525 = vadd.f32 %v926, %v1467
        %v1526 = vadd.f32 %v927, %v1472
        %v1527 = vadd.f32 %v928, %v1475
        %v1528 = vadd.f32 %v929, %v1480
        %v1529 = vadd.f32 %v930, %v1483
        %v1530 = vadd.f32 %v931, %v1488
        %v1531 = vadd.f32 %v932, %v1491
        %v1532 = vadd.f32 %v933, %v1496
        %v1533 = vadd.f32 %v934, %v1499
        %v1534 = vld [vmem:[#allocation2 + $0x9] sm:$0xff]
        %v1535 = vld [vmem:[#allocation2 + $0x11] sm:$0xff]
        %v1536 = vld [vmem:[#allocation2 + $0x29] sm:$0xff]
        %v1537 = vld [vmem:[#allocation2 + $0x31] sm:$0xff]
        %v1538 = vld [vmem:[#allocation2 + $0x49] sm:$0xff]
        %v1539 = vld [vmem:[#allocation2 + $0x51] sm:$0xff]
        %v1540 = vld [vmem:[#allocation2 + $0x69] sm:$0xff]
        %v1541 = vld [vmem:[#allocation2 + $0x71] sm:$0xff]
        %v1542 = vld [vmem:[#allocation2 + $0x89] sm:$0xff]
        %v1543 = vld [vmem:[#allocation2 + $0x91] sm:$0xff]
        %v1544 = vld [vmem:[#allocation2 + $0xa9] sm:$0xff]
        %v1545 = vld [vmem:[#allocation2 + $0xb1] sm:$0xff]
        %v1546 = vld [vmem:[#allocation2 + $0xc9] sm:$0xff]
        %v1547 = vld [vmem:[#allocation2 + $0xd1] sm:$0xff]
        %v1548 = vld [vmem:[#allocation2 + $0xe9] sm:$0xff]
        %v1549 = vld [vmem:[#allocation2 + $0xf1] sm:$0xff]
        %v1550 = vld [vmem:[#allocation2 + $0x109] sm:$0xff]
        %v1551 = vld [vmem:[#allocation2 + $0x111] sm:$0xff]
        %v1552 = vld [vmem:[#allocation2 + $0x129] sm:$0xff]
        %v1553 = vld [vmem:[#allocation2 + $0x131] sm:$0xff]
        %v1554 = vld [vmem:[#allocation2 + $0x149] sm:$0xff]
        %v1555 = vld [vmem:[#allocation2 + $0x151] sm:$0xff]
        %v1556 = vld [vmem:[#allocation2 + $0x169] sm:$0xff]
        %v1557 = vld [vmem:[#allocation2 + $0x171] sm:$0xff]
        %v1558 = vld [vmem:[#allocation2 + $0x189] sm:$0xff]
        %v1559 = vld [vmem:[#allocation2 + $0x191] sm:$0xff]
        %v1560 = vld [vmem:[#allocation2 + $0x1a9] sm:$0xff]
        %v1561 = vld [vmem:[#allocation2 + $0x1b1] sm:$0xff]
        %v1562 = vld [vmem:[#allocation2 + $0x1c9] sm:$0xff]
        %v1563 = vld [vmem:[#allocation2 + $0x1d1] sm:$0xff]
        %v1564 = vld [vmem:[#allocation2 + $0x1e9] sm:$0xff]
        %v1565 = vld [vmem:[#allocation2 + $0x1f1] sm:$0xff]
        %v1566 = vld [vmem:[#allocation2 + $0x209] sm:$0xff]
        %v1567 = vld [vmem:[#allocation2 + $0x211] sm:$0xff]
        %v1568 = vld [vmem:[#allocation2 + $0x229] sm:$0xff]
        %v1569 = vld [vmem:[#allocation2 + $0x231] sm:$0xff]
        %1602 = vrot.lane.b32.xlu0 %v1536, 8
        %v1603 = vpop.permute.xlu0 %1602
        %1604 = vrot.lane.b32.xlu0 %v1537, 8
        %v1605 = vpop.permute.xlu0 %1604
        %1606 = vrot.lane.b32.xlu0 %v1538, 8
        %v1607 = vpop.permute.xlu0 %1606
        %1608 = vrot.lane.b32.xlu0 %v1539, 8
        %v1609 = vpop.permute.xlu0 %1608
        %1610 = vrot.lane.b32.xlu0 %v1540, 8
        %v1611 = vpop.permute.xlu0 %1610
        %1612 = vrot.lane.b32.xlu0 %v1541, 8
        %v1613 = vpop.permute.xlu0 %1612
        %1614 = vrot.lane.b32.xlu0 %v1542, 8
        %v1615 = vpop.permute.xlu0 %1614
        %1616 = vrot.lane.b32.xlu0 %v1543, 8
        %v1617 = vpop.permute.xlu0 %1616
        %1618 = vrot.lane.b32.xlu0 %v1544, 8
        %v1619 = vpop.permute.xlu0 %1618
        %1620 = vrot.lane.b32.xlu0 %v1545, 8
        %v1621 = vpop.permute.xlu0 %1620
        %1622 = vrot.lane.b32.xlu0 %v1546, 8
        %v1623 = vpop.permute.xlu0 %1622
        %1624 = vrot.lane.b32.xlu0 %v1547, 8
        %v1625 = vpop.permute.xlu0 %1624
        %1626 = vrot.lane.b32.xlu0 %v1548, 8
        %v1627 = vpop.permute.xlu0 %1626
        %1628 = vrot.lane.b32.xlu0 %v1549, 8
        %v1629 = vpop.permute.xlu0 %1628
        %1630 = vrot.lane.b32.xlu0 %v1550, 8
        %v1631 = vpop.permute.xlu0 %1630
        %1632 = vrot.lane.b32.xlu0 %v1551, 8
        %v1633 = vpop.permute.xlu0 %1632
        %1634 = vrot.lane.b32.xlu0 %v1552, 8
        %v1635 = vpop.permute.xlu0 %1634
        %1636 = vrot.lane.b32.xlu0 %v1553, 8
        %v1637 = vpop.permute.xlu0 %1636
        %1638 = vrot.lane.b32.xlu0 %v1554, 8
        %v1639 = vpop.permute.xlu0 %1638
        %1640 = vrot.lane.b32.xlu0 %v1555, 8
        %v1641 = vpop.permute.xlu0 %1640
        %1642 = vrot.lane.b32.xlu0 %v1556, 8
        %v1643 = vpop.permute.xlu0 %1642
        %1644 = vrot.lane.b32.xlu0 %v1557, 8
        %v1645 = vpop.permute.xlu0 %1644
        %1646 = vrot.lane.b32.xlu0 %v1558, 8
        %v1647 = vpop.permute.xlu0 %1646
        %1648 = vrot.lane.b32.xlu0 %v1559, 8
        %v1649 = vpop.permute.xlu0 %1648
        %1650 = vrot.lane.b32.xlu0 %v1560, 8
        %v1651 = vpop.permute.xlu0 %1650
        %1652 = vrot.lane.b32.xlu0 %v1561, 8
        %v1653 = vpop.permute.xlu0 %1652
        %1654 = vrot.lane.b32.xlu0 %v1562, 8
        %v1655 = vpop.permute.xlu0 %1654
        %1656 = vrot.lane.b32.xlu0 %v1563, 8
        %v1657 = vpop.permute.xlu0 %1656
        %1658 = vrot.lane.b32.xlu0 %v1564, 8
        %v1659 = vpop.permute.xlu0 %1658
        %1660 = vrot.lane.b32.xlu0 %v1565, 8
        %v1661 = vpop.permute.xlu0 %1660
        %1662 = vrot.lane.b32.xlu0 %v1566, 8
        %v1663 = vpop.permute.xlu0 %1662
        %1664 = vrot.lane.b32.xlu0 %v1567, 8
        %v1665 = vpop.permute.xlu0 %1664
        %1700 = vrot.lane.b32.xlu0 %v1538, 16
        %v1701 = vpop.permute.xlu0 %1700
        %1702 = vrot.lane.b32.xlu0 %v1539, 16
        %v1703 = vpop.permute.xlu0 %1702
        %1704 = vrot.lane.b32.xlu0 %v1540, 16
        %v1705 = vpop.permute.xlu0 %1704
        %1706 = vrot.lane.b32.xlu0 %v1541, 16
        %v1707 = vpop.permute.xlu0 %1706
        %1708 = vrot.lane.b32.xlu0 %v1542, 16
        %v1709 = vpop.permute.xlu0 %1708
        %1710 = vrot.lane.b32.xlu0 %v1543, 16
        %v1711 = vpop.permute.xlu0 %1710
        %1712 = vrot.lane.b32.xlu0 %v1544, 16
        %v1713 = vpop.permute.xlu0 %1712
        %1714 = vrot.lane.b32.xlu0 %v1545, 16
        %v1715 = vpop.permute.xlu0 %1714
        %1716 = vrot.lane.b32.xlu0 %v1546, 16
        %v1717 = vpop.permute.xlu0 %1716
        %1718 = vrot.lane.b32.xlu0 %v1547, 16
        %v1719 = vpop.permute.xlu0 %1718
        %1720 = vrot.lane.b32.xlu0 %v1548, 16
        %v1721 = vpop.permute.xlu0 %1720
        %1722 = vrot.lane.b32.xlu0 %v1549, 16
        %v1723 = vpop.permute.xlu0 %1722
        %1724 = vrot.lane.b32.xlu0 %v1550, 16
        %v1725 = vpop.permute.xlu0 %1724
        %1726 = vrot.lane.b32.xlu0 %v1551, 16
        %v1727 = vpop.permute.xlu0 %1726
        %1728 = vrot.lane.b32.xlu0 %v1552, 16
        %v1729 = vpop.permute.xlu0 %1728
        %1730 = vrot.lane.b32.xlu0 %v1553, 16
        %v1731 = vpop.permute.xlu0 %1730
        %1732 = vrot.lane.b32.xlu0 %v1554, 16
        %v1733 = vpop.permute.xlu0 %1732
        %1734 = vrot.lane.b32.xlu0 %v1555, 16
        %v1735 = vpop.permute.xlu0 %1734
        %1736 = vrot.lane.b32.xlu0 %v1556, 16
        %v1737 = vpop.permute.xlu0 %1736
        %1738 = vrot.lane.b32.xlu0 %v1557, 16
        %v1739 = vpop.permute.xlu0 %1738
        %1740 = vrot.lane.b32.xlu0 %v1558, 16
        %v1741 = vpop.permute.xlu0 %1740
        %1742 = vrot.lane.b32.xlu0 %v1559, 16
        %v1743 = vpop.permute.xlu0 %1742
        %1744 = vrot.lane.b32.xlu0 %v1560, 16
        %v1745 = vpop.permute.xlu0 %1744
        %1746 = vrot.lane.b32.xlu0 %v1561, 16
        %v1747 = vpop.permute.xlu0 %1746
        %1748 = vrot.lane.b32.xlu0 %v1562, 16
        %v1749 = vpop.permute.xlu0 %1748
        %1750 = vrot.lane.b32.xlu0 %v1563, 16
        %v1751 = vpop.permute.xlu0 %1750
        %1752 = vrot.lane.b32.xlu0 %v1564, 16
        %v1753 = vpop.permute.xlu0 %1752
        %1754 = vrot.lane.b32.xlu0 %v1565, 16
        %v1755 = vpop.permute.xlu0 %1754
        %1756 = vrot.lane.b32.xlu0 %v1566, 16
        %v1757 = vpop.permute.xlu0 %1756
        %1758 = vrot.lane.b32.xlu0 %v1567, 16
        %v1759 = vpop.permute.xlu0 %1758
        %1760 = vrot.lane.b32.xlu0 %v1568, 16
        %v1761 = vpop.permute.xlu0 %1760
        %1762 = vrot.lane.b32.xlu0 %v1569, 16
        %v1763 = vpop.permute.xlu0 %1762
        %v1796 = vsel %vm252, %v1534, %v1603
        %v1797 = vsel %vm252, %v1535, %v1605
        %v1798 = vsel %vm252, %v1536, %v1607
        %v1799 = vsel %vm252, %v1537, %v1609
        %v1800 = vsel %vm252, %v1538, %v1611
        %v1801 = vsel %vm252, %v1539, %v1613
        %v1802 = vsel %vm252, %v1540, %v1615
        %v1803 = vsel %vm252, %v1541, %v1617
        %v1804 = vsel %vm252, %v1542, %v1619
        %v1805 = vsel %vm252, %v1543, %v1621
        %v1806 = vsel %vm252, %v1544, %v1623
        %v1807 = vsel %vm252, %v1545, %v1625
        %v1808 = vsel %vm252, %v1546, %v1627
        %v1809 = vsel %vm252, %v1547, %v1629
        %v1810 = vsel %vm252, %v1548, %v1631
        %v1811 = vsel %vm252, %v1549, %v1633
        %v1812 = vsel %vm252, %v1550, %v1635
        %v1813 = vsel %vm252, %v1551, %v1637
        %v1814 = vsel %vm252, %v1552, %v1639
        %v1815 = vsel %vm252, %v1553, %v1641
        %v1816 = vsel %vm252, %v1554, %v1643
        %v1817 = vsel %vm252, %v1555, %v1645
        %v1818 = vsel %vm252, %v1556, %v1647
        %v1819 = vsel %vm252, %v1557, %v1649
        %v1820 = vsel %vm252, %v1558, %v1651
        %v1821 = vsel %vm252, %v1559, %v1653
        %v1822 = vsel %vm252, %v1560, %v1655
        %v1823 = vsel %vm252, %v1561, %v1657
        %v1824 = vsel %vm252, %v1562, %v1659
        %v1825 = vsel %vm252, %v1563, %v1661
        %v1826 = vsel %vm252, %v1564, %v1663
        %v1827 = vsel %vm252, %v1565, %v1665
        %v1828 = vsel %vm622, %v1796, %v1701
        %v1829 = vsel %vm622, %v1797, %v1703
        %v1830 = vsel %vm622, %v1798, %v1705
        %v1831 = vsel %vm622, %v1799, %v1707
        %v1832 = vsel %vm622, %v1800, %v1709
        %v1833 = vsel %vm622, %v1801, %v1711
        %v1834 = vsel %vm622, %v1802, %v1713
        %v1835 = vsel %vm622, %v1803, %v1715
        %v1836 = vsel %vm622, %v1804, %v1717
        %v1837 = vsel %vm622, %v1805, %v1719
        %v1838 = vsel %vm622, %v1806, %v1721
        %v1839 = vsel %vm622, %v1807, %v1723
        %v1840 = vsel %vm622, %v1808, %v1725
        %v1841 = vsel %vm622, %v1809, %v1727
        %v1842 = vsel %vm622, %v1810, %v1729
        %v1843 = vsel %vm622, %v1811, %v1731
        %v1844 = vsel %vm622, %v1812, %v1733
        %v1845 = vsel %vm622, %v1813, %v1735
        %v1846 = vsel %vm622, %v1814, %v1737
        %v1847 = vsel %vm622, %v1815, %v1739
        %v1848 = vsel %vm622, %v1816, %v1741
        %v1849 = vsel %vm622, %v1817, %v1743
        %v1850 = vsel %vm622, %v1818, %v1745
        %v1851 = vsel %vm622, %v1819, %v1747
        %v1852 = vsel %vm622, %v1820, %v1749
        %v1853 = vsel %vm622, %v1821, %v1751
        %v1854 = vsel %vm622, %v1822, %v1753
        %v1855 = vsel %vm622, %v1823, %v1755
        %v1856 = vsel %vm622, %v1824, %v1757
        %v1857 = vsel %vm622, %v1825, %v1759
        %v1858 = vsel %vm622, %v1826, %v1761
        %v1859 = vsel %vm622, %v1827, %v1763
        %v1860 = vpack.c.bf16 %v1829, %v1828
        %v1861 = vpack.c.bf16 %v1831, %v1830
        %v1862 = vpack.c.bf16 %v1833, %v1832
        %v1863 = vpack.c.bf16 %v1835, %v1834
        %v1864 = vpack.c.bf16 %v1837, %v1836
        %v1865 = vpack.c.bf16 %v1839, %v1838
        %v1866 = vpack.c.bf16 %v1841, %v1840
        %v1867 = vpack.c.bf16 %v1843, %v1842
        %v1868 = vpack.c.bf16 %v1845, %v1844
        %v1869 = vpack.c.bf16 %v1847, %v1846
        %v1870 = vpack.c.bf16 %v1849, %v1848
        %v1871 = vpack.c.bf16 %v1851, %v1850
        %v1872 = vpack.c.bf16 %v1853, %v1852
        %v1873 = vpack.c.bf16 %v1855, %v1854
        %v1874 = vpack.c.bf16 %v1857, %v1856
        %v1875 = vpack.c.bf16 %v1859, %v1858
        %s1876 = scalar_lea.vmem %s1, 24
        %v1877 = vld [vmem:[%s1876] sm:$0xf]
        %v1878 = vld [vmem:[%s1876 + $0x4] sm:$0xf]
        %v1879 = vld [vmem:[%s1876 + $0x8] sm:$0xf]
        %v1883 = vunpack.c.l.b16 %v1877
        %v1884 = vunpack.c.l.b16 %v1878
        %v1885 = vunpack.c.l.b16 %v1879
        %v1886 = vpack.c.b16 %v1884, %v1883
        %v1887 = vpack.c.b16 %v1885, %v1885
        %v1890 = vsel %vm683, %v1860, 0
        %v1893 = vsel %vm683, %v1861, 0
        %v1896 = vsel %vm683, %v1862, 0
        %v1899 = vsel %vm683, %v1863, 0
        %v1902 = vsel %vm683, %v1864, 0
        %v1905 = vsel %vm683, %v1865, 0
        %v1908 = vsel %vm683, %v1866, 0
        %v1911 = vsel %vm683, %v1867, 0
        %v1914 = vsel %vm683, %v1868, 0
        %v1917 = vsel %vm683, %v1869, 0
        %v1920 = vsel %vm683, %v1870, 0
        %v1923 = vsel %vm683, %v1871, 0
        %v1926 = vsel %vm683, %v1872, 0
        %v1929 = vsel %vm683, %v1873, 0
        %v1932 = vsel %vm683, %v1874, 0
        %v1935 = vsel %vm683, %v1875, 0
        %v1938 = vsel %vm732, %v1887, 0
        %1940 = vmatprep.subr.bf16.mxu0 0
        %1941 = vmatpush1.bf16.msra.mxu0 %v1886
        %1942 = vmatprep.subr.bf16.mxu0 0
        %1943 = vmatpush1.bf16.msra.mxu0 %v1938
        %1944 = vmatprep.subr.bf16.mxu0 0
        %1945 = vmatpush1.bf16.msra.mxu0 0
        %1946 = vmatprep.subr.bf16.mxu0 0
        %1947 = vmatpush1.bf16.msra.mxu0 0
        %1948 = vmatprep.subr.bf16.mxu0 0
        %1949 = vmatpush1.bf16.msra.mxu0 0
        %1950 = vmatprep.subr.bf16.mxu0 0
        %1951 = vmatpush1.bf16.msra.mxu0 0
        %1952 = vmatprep.subr.bf16.mxu0 0
        %1953 = vmatpush1.bf16.msra.mxu0 0
        %1954 = vmatprep.subr.bf16.mxu0 0
        %1955 = vmatpush1.bf16.msra.mxu0 0
        %1956 = vmatprep.subr.bf16.mxu0 0
        %1957 = vmatpush1.bf16.msra.mxu0 0
        %1958 = vmatprep.subr.bf16.mxu0 0
        %1959 = vmatpush1.bf16.msra.mxu0 0
        %1960 = vmatprep.subr.bf16.mxu0 0
        %1961 = vmatpush1.bf16.msra.mxu0 0
        %1962 = vmatprep.subr.bf16.mxu0 0
        %1963 = vmatpush1.bf16.msra.mxu0 0
        %1964 = vmatprep.subr.bf16.mxu0 0
        %1965 = vmatpush1.bf16.msra.mxu0 0
        %1966 = vmatprep.subr.bf16.mxu0 0
        %1967 = vmatpush1.bf16.msra.mxu0 0
        %1968 = vmatprep.subr.bf16.mxu0 0
        %1969 = vmatpush1.bf16.msra.mxu0 0
        %1970 = vmatprep.subr.bf16.mxu0 0
        %1971 = vmatpush1.bf16.msra.mxu0 0
        %1972 = vmatprep.mubr.bf16.mxu0 0
        %1973 = vmatmul.mubr.bf16.gmra.mrb[0].mxu0 %v1890
        %v1974 = vpop.f32.mrb[0].mxu0
        %v1975 = vadd.f32 0.0, %v1974
        %v1976 = vpop.f32.mrb[0].mxu0
        %v1977 = vpop.f32.mrb[0].mxu0
        %v1978 = vadd.f32 0.0, %v1977
        %v1979 = vpop.f32.mrb[0].mxu0
        %1980 = vmatprep.mubr.bf16.mxu0 0
        %1981 = vmatmul.mubr.bf16.gmra.mrb[0].mxu0 %v1893
        %v1982 = vpop.f32.mrb[0].mxu0
        %v1983 = vadd.f32 0.0, %v1982
        %v1984 = vpop.f32.mrb[0].mxu0
        %v1985 = vpop.f32.mrb[0].mxu0
        %v1986 = vadd.f32 0.0, %v1985
        %v1987 = vpop.f32.mrb[0].mxu0
        %1988 = vmatprep.mubr.bf16.mxu0 0
        %1989 = vmatmul.mubr.bf16.gmra.mrb[0].mxu0 %v1896
        %v1990 = vpop.f32.mrb[0].mxu0
        %v1991 = vadd.f32 0.0, %v1990
        %v1992 = vpop.f32.mrb[0].mxu0
        %v1993 = vpop.f32.mrb[0].mxu0
        %v1994 = vadd.f32 0.0, %v1993
        %v1995 = vpop.f32.mrb[0].mxu0
        %1996 = vmatprep.mubr.bf16.mxu0 0
        %1997 = vmatmul.mubr.bf16.gmra.mrb[0].mxu0 %v1899
        %v1998 = vpop.f32.mrb[0].mxu0
        %v1999 = vadd.f32 0.0, %v1998
        %v2000 = vpop.f32.mrb[0].mxu0
        %v2001 = vpop.f32.mrb[0].mxu0
        %v2002 = vadd.f32 0.0, %v2001
        %v2003 = vpop.f32.mrb[0].mxu0
        %2004 = vmatprep.mubr.bf16.mxu0 0
        %2005 = vmatmul.mubr.bf16.gmra.mrb[0].mxu0 %v1902
        %v2006 = vpop.f32.mrb[0].mxu0
        %v2007 = vadd.f32 0.0, %v2006
        %v2008 = vpop.f32.mrb[0].mxu0
        %v2009 = vpop.f32.mrb[0].mxu0
        %v2010 = vadd.f32 0.0, %v2009
        %v2011 = vpop.f32.mrb[0].mxu0
        %2012 = vmatprep.mubr.bf16.mxu0 0
        %2013 = vmatmul.mubr.bf16.gmra.mrb[0].mxu0 %v1905
        %v2014 = vpop.f32.mrb[0].mxu0
        %v2015 = vadd.f32 0.0, %v2014
        %v2016 = vpop.f32.mrb[0].mxu0
        %v2017 = vpop.f32.mrb[0].mxu0
        %v2018 = vadd.f32 0.0, %v2017
        %v2019 = vpop.f32.mrb[0].mxu0
        %2020 = vmatprep.mubr.bf16.mxu0 0
        %2021 = vmatmul.mubr.bf16.gmra.mrb[0].mxu0 %v1908
        %v2022 = vpop.f32.mrb[0].mxu0
        %v2023 = vadd.f32 0.0, %v2022
        %v2024 = vpop.f32.mrb[0].mxu0
        %v2025 = vpop.f32.mrb[0].mxu0
        %v2026 = vadd.f32 0.0, %v2025
        %v2027 = vpop.f32.mrb[0].mxu0
        %2028 = vmatprep.mubr.bf16.mxu0 0
        %2029 = vmatmul.mubr.bf16.gmra.mrb[0].mxu0 %v1911
        %v2030 = vpop.f32.mrb[0].mxu0
        %v2031 = vadd.f32 0.0, %v2030
        %v2032 = vpop.f32.mrb[0].mxu0
        %v2033 = vpop.f32.mrb[0].mxu0
        %v2034 = vadd.f32 0.0, %v2033
        %v2035 = vpop.f32.mrb[0].mxu0
        %2036 = vmatprep.mubr.bf16.mxu0 0
        %2037 = vmatmul.mubr.bf16.gmra.mrb[0].mxu0 %v1914
        %v2038 = vpop.f32.mrb[0].mxu0
        %v2039 = vadd.f32 0.0, %v2038
        %v2040 = vpop.f32.mrb[0].mxu0
        %v2041 = vpop.f32.mrb[0].mxu0
        %v2042 = vadd.f32 0.0, %v2041
        %v2043 = vpop.f32.mrb[0].mxu0
        %2044 = vmatprep.mubr.bf16.mxu0 0
        %2045 = vmatmul.mubr.bf16.gmra.mrb[0].mxu0 %v1917
        %v2046 = vpop.f32.mrb[0].mxu0
        %v2047 = vadd.f32 0.0, %v2046
        %v2048 = vpop.f32.mrb[0].mxu0
        %v2049 = vpop.f32.mrb[0].mxu0
        %v2050 = vadd.f32 0.0, %v2049
        %v2051 = vpop.f32.mrb[0].mxu0
        %2052 = vmatprep.mubr.bf16.mxu0 0
        %2053 = vmatmul.mubr.bf16.gmra.mrb[0].mxu0 %v1920
        %v2054 = vpop.f32.mrb[0].mxu0
        %v2055 = vadd.f32 0.0, %v2054
        %v2056 = vpop.f32.mrb[0].mxu0
        %v2057 = vpop.f32.mrb[0].mxu0
        %v2058 = vadd.f32 0.0, %v2057
        %v2059 = vpop.f32.mrb[0].mxu0
        %2060 = vmatprep.mubr.bf16.mxu0 0
        %2061 = vmatmul.mubr.bf16.gmra.mrb[0].mxu0 %v1923
        %v2062 = vpop.f32.mrb[0].mxu0
        %v2063 = vadd.f32 0.0, %v2062
        %v2064 = vpop.f32.mrb[0].mxu0
        %v2065 = vpop.f32.mrb[0].mxu0
        %v2066 = vadd.f32 0.0, %v2065
        %v2067 = vpop.f32.mrb[0].mxu0
        %2068 = vmatprep.mubr.bf16.mxu0 0
        %2069 = vmatmul.mubr.bf16.gmra.mrb[0].mxu0 %v1926
        %v2070 = vpop.f32.mrb[0].mxu0
        %v2071 = vadd.f32 0.0, %v2070
        %v2072 = vpop.f32.mrb[0].mxu0
        %v2073 = vpop.f32.mrb[0].mxu0
        %v2074 = vadd.f32 0.0, %v2073
        %v2075 = vpop.f32.mrb[0].mxu0
        %2076 = vmatprep.mubr.bf16.mxu0 0
        %2077 = vmatmul.mubr.bf16.gmra.mrb[0].mxu0 %v1929
        %v2078 = vpop.f32.mrb[0].mxu0
        %v2079 = vadd.f32 0.0, %v2078
        %v2080 = vpop.f32.mrb[0].mxu0
        %v2081 = vpop.f32.mrb[0].mxu0
        %v2082 = vadd.f32 0.0, %v2081
        %v2083 = vpop.f32.mrb[0].mxu0
        %2084 = vmatprep.mubr.bf16.mxu0 0
        %2085 = vmatmul.mubr.bf16.gmra.mrb[0].mxu0 %v1932
        %v2086 = vpop.f32.mrb[0].mxu0
        %v2087 = vadd.f32 0.0, %v2086
        %v2088 = vpop.f32.mrb[0].mxu0
        %v2089 = vpop.f32.mrb[0].mxu0
        %v2090 = vadd.f32 0.0, %v2089
        %v2091 = vpop.f32.mrb[0].mxu0
        %2092 = vmatprep.mubr.bf16.mxu0 0
        %2093 = vmatmul.mubr.bf16.gmra.mrb[0].mxu0 %v1935
        %v2094 = vpop.f32.mrb[0].mxu0
        %v2095 = vadd.f32 0.0, %v2094
        %v2096 = vpop.f32.mrb[0].mxu0
        %v2097 = vpop.f32.mrb[0].mxu0
        %v2098 = vadd.f32 0.0, %v2097
        %v2099 = vpop.f32.mrb[0].mxu0
        %2100 = vdwg.mxu0
        %v2101 = vadd.f32 %v1502, %v1975
        %v2102 = vadd.f32 %v1503, %v1978
        %v2103 = vadd.f32 %v1504, %v1983
        %v2104 = vadd.f32 %v1505, %v1986
        %v2105 = vadd.f32 %v1506, %v1991
        %v2106 = vadd.f32 %v1507, %v1994
        %v2107 = vadd.f32 %v1508, %v1999
        %v2108 = vadd.f32 %v1509, %v2002
        %v2109 = vadd.f32 %v1510, %v2007
        %v2110 = vadd.f32 %v1511, %v2010
        %v2111 = vadd.f32 %v1512, %v2015
        %v2112 = vadd.f32 %v1513, %v2018
        %v2113 = vadd.f32 %v1514, %v2023
        %v2114 = vadd.f32 %v1515, %v2026
        %v2115 = vadd.f32 %v1516, %v2031
        %v2116 = vadd.f32 %v1517, %v2034
        %v2117 = vadd.f32 %v1518, %v2039
        %v2118 = vadd.f32 %v1519, %v2042
        %v2119 = vadd.f32 %v1520, %v2047
        %v2120 = vadd.f32 %v1521, %v2050
        %v2121 = vadd.f32 %v1522, %v2055
        %v2122 = vadd.f32 %v1523, %v2058
        %v2123 = vadd.f32 %v1524, %v2063
        %v2124 = vadd.f32 %v1525, %v2066
        %v2125 = vadd.f32 %v1526, %v2071
        %v2126 = vadd.f32 %v1527, %v2074
        %v2127 = vadd.f32 %v1528, %v2079
        %v2128 = vadd.f32 %v1529, %v2082
        %v2129 = vadd.f32 %v1530, %v2087
        %v2130 = vadd.f32 %v1531, %v2090
        %v2131 = vadd.f32 %v1532, %v2095
        %v2132 = vadd.f32 %v1533, %v2098
        %v2133 = vmax.f32 %v2101, 0.0
        %v2134 = vmax.f32 %v2102, 0.0
        %v2135 = vmax.f32 %v2103, 0.0
        %v2136 = vmax.f32 %v2104, 0.0
        %v2137 = vmax.f32 %v2105, 0.0
        %v2138 = vmax.f32 %v2106, 0.0
        %v2139 = vmax.f32 %v2107, 0.0
        %v2140 = vmax.f32 %v2108, 0.0
        %v2141 = vmax.f32 %v2109, 0.0
        %v2142 = vmax.f32 %v2110, 0.0
        %v2143 = vmax.f32 %v2111, 0.0
        %v2144 = vmax.f32 %v2112, 0.0
        %v2145 = vmax.f32 %v2113, 0.0
        %v2146 = vmax.f32 %v2114, 0.0
        %v2147 = vmax.f32 %v2115, 0.0
        %v2148 = vmax.f32 %v2116, 0.0
        %v2149 = vmax.f32 %v2117, 0.0
        %v2150 = vmax.f32 %v2118, 0.0
        %v2151 = vmax.f32 %v2119, 0.0
        %v2152 = vmax.f32 %v2120, 0.0
        %v2153 = vmax.f32 %v2121, 0.0
        %v2154 = vmax.f32 %v2122, 0.0
        %v2155 = vmax.f32 %v2123, 0.0
        %v2156 = vmax.f32 %v2124, 0.0
        %v2157 = vmax.f32 %v2125, 0.0
        %v2158 = vmax.f32 %v2126, 0.0
        %v2159 = vmax.f32 %v2127, 0.0
        %v2160 = vmax.f32 %v2128, 0.0
        %v2161 = vmax.f32 %v2129, 0.0
        %v2162 = vmax.f32 %v2130, 0.0
        %v2163 = vmax.f32 %v2131, 0.0
        %v2164 = vmax.f32 %v2132, 0.0
        %vm2165 = vcmask 523264
        %v2166 = vsel %vm2165, %v2133, -inf
        %v2167 = vsel %vm2165, %v2135, -inf
        %v2168 = vmax.f32 %v2166, %v2167
        %v2169 = vsel %vm2165, %v2134, -inf
        %v2170 = vsel %vm2165, %v2136, -inf
        %v2171 = vmax.f32 %v2169, %v2170
        %v2172 = vsel %vm2165, %v2137, -inf
        %v2173 = vsel %vm2165, %v2139, -inf
        %v2174 = vmax.f32 %v2172, %v2173
        %v2175 = vsel %vm2165, %v2138, -inf
        %v2176 = vsel %vm2165, %v2140, -inf
        %v2177 = vmax.f32 %v2175, %v2176
        %v2178 = vsel %vm2165, %v2141, -inf
        %v2179 = vsel %vm2165, %v2143, -inf
        %v2180 = vmax.f32 %v2178, %v2179
        %v2181 = vsel %vm2165, %v2142, -inf
        %v2182 = vsel %vm2165, %v2144, -inf
        %v2183 = vmax.f32 %v2181, %v2182
        %v2184 = vsel %vm2165, %v2145, -inf
        %v2185 = vsel %vm2165, %v2147, -inf
        %v2186 = vmax.f32 %v2184, %v2185
        %v2187 = vsel %vm2165, %v2146, -inf
        %v2188 = vsel %vm2165, %v2148, -inf
        %v2189 = vmax.f32 %v2187, %v2188
        %v2190 = vsel %vm2165, %v2149, -inf
        %v2191 = vsel %vm2165, %v2151, -inf
        %v2192 = vmax.f32 %v2190, %v2191
        %v2193 = vsel %vm2165, %v2150, -inf
        %v2194 = vsel %vm2165, %v2152, -inf
        %v2195 = vmax.f32 %v2193, %v2194
        %v2196 = vsel %vm2165, %v2153, -inf
        %v2197 = vsel %vm2165, %v2155, -inf
        %v2198 = vmax.f32 %v2196, %v2197
        %v2199 = vsel %vm2165, %v2154, -inf
        %v2200 = vsel %vm2165, %v2156, -inf
        %v2201 = vmax.f32 %v2199, %v2200
        %v2202 = vsel %vm2165, %v2157, -inf
        %v2203 = vsel %vm2165, %v2159, -inf
        %v2204 = vmax.f32 %v2202, %v2203
        %v2205 = vsel %vm2165, %v2158, -inf
        %v2206 = vsel %vm2165, %v2160, -inf
        %v2207 = vmax.f32 %v2205, %v2206
        %v2208 = vsel %vm2165, %v2161, -inf
        %v2209 = vsel %vm2165, %v2163, -inf
        %v2210 = vmax.f32 %v2208, %v2209
        %v2211 = vsel %vm2165, %v2162, -inf
        %v2212 = vsel %vm2165, %v2164, -inf
        %v2213 = vmax.f32 %v2211, %v2212
        %2214 = vst.msk [vmem:[#allocation3] sm:$0xff] %vm2165, %v2168
        %2215 = vst.msk [vmem:[#allocation3 + $0x8] sm:$0xff] %vm2165, %v2171
        %2216 = vst.msk [vmem:[#allocation3 + $0x10] sm:$0xff] %vm2165, %v2174
        %2217 = vst.msk [vmem:[#allocation3 + $0x18] sm:$0xff] %vm2165, %v2177
        %2218 = vst.msk [vmem:[#allocation3 + $0x20] sm:$0xff] %vm2165, %v2180
        %2219 = vst.msk [vmem:[#allocation3 + $0x28] sm:$0xff] %vm2165, %v2183
        %2220 = vst.msk [vmem:[#allocation3 + $0x30] sm:$0xff] %vm2165, %v2186
        %2221 = vst.msk [vmem:[#allocation3 + $0x38] sm:$0xff] %vm2165, %v2189
        %2222 = vst.msk [vmem:[#allocation3 + $0x40] sm:$0xff] %vm2165, %v2192
        %2223 = vst.msk [vmem:[#allocation3 + $0x48] sm:$0xff] %vm2165, %v2195
        %2224 = vst.msk [vmem:[#allocation3 + $0x50] sm:$0xff] %vm2165, %v2198
        %2225 = vst.msk [vmem:[#allocation3 + $0x58] sm:$0xff] %vm2165, %v2201
        %2226 = vst.msk [vmem:[#allocation3 + $0x60] sm:$0xff] %vm2165, %v2204
        %2227 = vst.msk [vmem:[#allocation3 + $0x68] sm:$0xff] %vm2165, %v2207
        %2228 = vst.msk [vmem:[#allocation3 + $0x70] sm:$0xff] %vm2165, %v2210
        %2229 = vst.msk [vmem:[#allocation3 + $0x78] sm:$0xff] %vm2165, %v2213
        %v2230 = vld [vmem:[#allocation3] ss:$2 sm:$0xff]
        %s2231 = scalar_lea.vmem [#allocation3], 16
        %v2232 = vld [vmem:[%s2231] ss:$2 sm:$0xff]
        %s2233 = scalar_lea.vmem [#allocation3], 32
        %v2234 = vld [vmem:[%s2233] ss:$2 sm:$0xff]
        %s2235 = scalar_lea.vmem [#allocation3], 48
        %v2236 = vld [vmem:[%s2235] ss:$2 sm:$0xff]
        %s2237 = scalar_lea.vmem [#allocation3], 64
        %v2238 = vld [vmem:[%s2237] ss:$2 sm:$0xff]
        %s2239 = scalar_lea.vmem [#allocation3], 80
        %v2240 = vld [vmem:[%s2239] ss:$2 sm:$0xff]
        %s2241 = scalar_lea.vmem [#allocation3], 96
        %v2242 = vld [vmem:[%s2241] ss:$2 sm:$0xff]
        %s2243 = scalar_lea.vmem [#allocation3], 112
        %v2244 = vld [vmem:[%s2243] ss:$2 sm:$0xff]
        %s2245 = scalar_lea.vmem [#allocation3], 1
        %v2246 = vld [vmem:[%s2245] ss:$2 sm:$0xff]
        %s2247 = scalar_lea.vmem [#allocation3], 17
        %v2248 = vld [vmem:[%s2247] ss:$2 sm:$0xff]
        %s2249 = scalar_lea.vmem [#allocation3], 33
        %v2250 = vld [vmem:[%s2249] ss:$2 sm:$0xff]
        %s2251 = scalar_lea.vmem [#allocation3], 49
        %v2252 = vld [vmem:[%s2251] ss:$2 sm:$0xff]
        %s2253 = scalar_lea.vmem [#allocation3], 65
        %v2254 = vld [vmem:[%s2253] ss:$2 sm:$0xff]
        %s2255 = scalar_lea.vmem [#allocation3], 81
        %v2256 = vld [vmem:[%s2255] ss:$2 sm:$0xff]
        %s2257 = scalar_lea.vmem [#allocation3], 97
        %v2258 = vld [vmem:[%s2257] ss:$2 sm:$0xff]
        %s2259 = scalar_lea.vmem [#allocation3], 113
        %v2260 = vld [vmem:[%s2259] ss:$2 sm:$0xff]
        %v2261 = vmax.f32 %v2230, %v2246
        %v2262 = vmax.f32 %v2232, %v2248
        %v2263 = vmax.f32 %v2234, %v2250
        %v2264 = vmax.f32 %v2236, %v2252
        %v2265 = vmax.f32 %v2238, %v2254
        %v2266 = vmax.f32 %v2240, %v2256
        %v2267 = vmax.f32 %v2242, %v2258
        %v2268 = vmax.f32 %v2244, %v2260
        %2269 = vst.msk [vmem:[%s209] sm:$0xff] %vm2165, %v2261
        %2270 = vst.msk [vmem:[%s209 + $0x8] sm:$0xff] %vm2165, %v2262
        %2271 = vst.msk [vmem:[%s209 + $0x10] sm:$0xff] %vm2165, %v2263
        %2272 = vst.msk [vmem:[%s209 + $0x18] sm:$0xff] %vm2165, %v2264
        %2273 = vst.msk [vmem:[%s209 + $0x20] sm:$0xff] %vm2165, %v2265
        %2274 = vst.msk [vmem:[%s209 + $0x28] sm:$0xff] %vm2165, %v2266
        %2275 = vst.msk [vmem:[%s209 + $0x30] sm:$0xff] %vm2165, %v2267
        %2276 = vst.msk [vmem:[%s209 + $0x38] sm:$0xff] %vm2165, %v2268
        %v2277 = vsel %vm2165, %v2261, inf
        %v2278 = vsel %vm2165, %v2262, inf
        %v2279 = vsel %vm2165, %v2263, inf
        %v2280 = vsel %vm2165, %v2264, inf
        %v2281 = vsel %vm2165, %v2265, inf
        %v2282 = vmin.f32 %v2277, %v2281
        %v2283 = vsel %vm2165, %v2266, inf
        %v2284 = vmin.f32 %v2278, %v2283
        %v2285 = vsel %vm2165, %v2267, inf
        %v2286 = vmin.f32 %v2279, %v2285
        %v2287 = vsel %vm2165, %v2268, inf
        %v2288 = vmin.f32 %v2280, %v2287
        %v2289 = vmin.f32 %v2282, %v2284
        %v2290 = vmin.f32 %v2286, %v2288
        %v2291 = vmin.f32 %v2289, %v2290
        %v2292 = vrot.slane %v2291, 4
        %v2293 = vmin.f32 %v2291, %v2292
        %v2294 = vrot.slane %v2293, 2
        %v2295 = vmin.f32 %v2293, %v2294
        %v2296 = vrot.slane %v2295, 1
        %v2297 = vmin.f32 %v2295, %v2296
        %v2298 = vsel %vm2165, %v2261, -inf
        %v2299 = vsel %vm2165, %v2262, -inf
        %v2300 = vsel %vm2165, %v2263, -inf
        %v2301 = vsel %vm2165, %v2264, -inf
        %v2302 = vsel %vm2165, %v2265, -inf
        %v2303 = vmax.f32 %v2298, %v2302
        %v2304 = vsel %vm2165, %v2266, -inf
        %v2305 = vmax.f32 %v2299, %v2304
        %v2306 = vsel %vm2165, %v2267, -inf
        %v2307 = vmax.f32 %v2300, %v2306
        %v2308 = vsel %vm2165, %v2268, -inf
        %v2309 = vmax.f32 %v2301, %v2308
        %v2310 = vmax.f32 %v2303, %v2305
        %v2311 = vmax.f32 %v2307, %v2309
        %v2312 = vmax.f32 %v2310, %v2311
        %v2313 = vrot.slane %v2312, 4
        %v2314 = vmax.f32 %v2312, %v2313
        %v2315 = vrot.slane %v2314, 2
        %v2316 = vmax.f32 %v2314, %v2315
        %v2317 = vrot.slane %v2316, 1
        %v2318 = vmax.f32 %v2316, %v2317
        %p2319 = scmp.eq.s32.totalorder %s21, 0
        // Predicated region
        $region33: #{tpu_custom_call.1} parent=31 // pred_check
          %p2320 = pneg %p2319
        $region34: #{tpu_custom_call.1} parent=31 // pred_check_branch
          %2322 = sbr.rel (%p2320) target = $region36
        $region35: #{tpu_custom_call.1} parent=31 // pred_region
          %vm2323 = vcmask 516096
          %2324 = vst.msk [vmem:[#allocation6] sm:$0x1] %vm2323, %v2297
          %2325 = vst.msk [vmem:[#allocation8] sm:$0x1] %vm2323, %v2318
        $region36: #{tpu_custom_call.1} parent=31 // pred_fallthru
          _
        %p2326 = scmp.gt.s32.totalorder %s21, 0
        // Predicated region
        $region37: #{tpu_custom_call.1} parent=31 // pred_check
          %p2327 = pneg %p2326
        $region38: #{tpu_custom_call.1} parent=31 // pred_check_branch
          %2329 = sbr.rel (%p2327) target = $region40
        $region39: #{tpu_custom_call.1} parent=31 // pred_region
          %v2330 = vld [vmem:[#allocation6] sm:$0x1]
          %v2331 = vmin.f32 %v2330, %v2297
          %vm2332 = vcmask 516096
          %2333 = vst.msk [vmem:[#allocation6] sm:$0x1] %vm2332, %v2331
          %v2334 = vld [vmem:[#allocation8] sm:$0x1]
          %v2335 = vmax.f32 %v2334, %v2318
          %2336 = vst.msk [vmem:[#allocation8] sm:$0x1] %vm2332, %v2335
        $region40: #{tpu_custom_call.1} parent=31 // pred_fallthru
          _
        %s2337 = sand.u32 %s97, 1
        %s2338 = scalar_lea.sflag [#allocation5], %s2337
        %s2339 = sand.u32 %s97, 1
        %s2340 = smul.addr %s2339, 64
        %s2341 = scalar_lea.vmem [#allocation4], %s2340
        // Predicated region
        $region41: #{tpu_custom_call.1} parent=31 // pred_check
          %p2342 = pneg %p107
        $region42: #{tpu_custom_call.1} parent=31 // pred_check_branch
          %2344 = sbr.rel (%p2342) target = $region44
        $region43: #{tpu_custom_call.1} parent=31 // pred_region
          %s2346 = ssub.s32 1024, 1024
          %2347 = vsyncadd %s2338, %s2346
          %s2348 = smul.addr %s21, 8
          %s2349 = smul.addr %s2348, 128
          %s2350 = scalar_lea.hbm %s3, %s2349
          %s2351 = sshll.u32 %s2341, 4
          %s2352 = int_to_ptr.vmem [resolvable:$true] %s2351
          %2357 = dma.vmem_to_hbm [thread:$0]  %s2352, 1024, %s2350, %s2338, 128, 128, 8
        $region44: #{tpu_custom_call.1} parent=31 // pred_fallthru
          _
        // Predicated region
        $region45: #{tpu_custom_call.1} parent=31 // pred_check
          %p2358 = pneg %p128
        $region46: #{tpu_custom_call.1} parent=31 // pred_check_branch
          %2360 = sbr.rel (%p2358) target = $region48
        $region47: #{tpu_custom_call.1} parent=31 // pred_region
          %s2362 = ssub.s32 16, 16
          %2363 = vsyncadd [#allocation7], %s2362
          %s2365 = sshll.u32 [#allocation6], 4
          %s2366 = int_to_ptr.vmem [resolvable:$true] %s2365
          %2368 = dma.vmem_to_hbm [thread:$0]  %s2366, 16, %s4, [#allocation7]
        $region48: #{tpu_custom_call.1} parent=31 // pred_fallthru
          _
        // Predicated region
        $region49: #{tpu_custom_call.1} parent=31 // pred_check
          %p2369 = pneg %p149
        $region50: #{tpu_custom_call.1} parent=31 // pred_check_branch
          %2371 = sbr.rel (%p2369) target = $region52
        $region51: #{tpu_custom_call.1} parent=31 // pred_region
          %s2373 = ssub.s32 16, 16
          %2374 = vsyncadd [#allocation7], %s2373
          %s2376 = sshll.u32 [#allocation8], 4
          %s2377 = int_to_ptr.vmem [resolvable:$true] %s2376
          %2379 = dma.vmem_to_hbm [thread:$0]  %s2377, 16, %s5, [#allocation7]
        $region52: #{tpu_custom_call.1} parent=31 // pred_fallthru
          _
        // Predicated region
        $region53: #{tpu_custom_call.1} parent=31 // pred_check
          %p2380 = pneg %p128
        $region54: #{tpu_custom_call.1} parent=31 // pred_check_branch
          %2382 = sbr.rel (%p2380) target = $region56
        $region55: #{tpu_custom_call.1} parent=31 // pred_region
          %2383 = dma.done [#allocation7], 16
        $region56: #{tpu_custom_call.1} parent=31 // pred_fallthru
          _
        // Predicated region
        $region57: #{tpu_custom_call.1} parent=31 // pred_check
          %p2384 = pneg %p149
        $region58: #{tpu_custom_call.1} parent=31 // pred_check_branch
          %2386 = sbr.rel (%p2384) target = $region60
        $region59: #{tpu_custom_call.1} parent=31 // pred_region
          %2387 = dma.done [#allocation7], 16
        $region60: #{tpu_custom_call.1} parent=31 // pred_fallthru
          _
      $region32: #{tpu_custom_call.1} parent=5 // pred_fallthru
        _
      %p2388 = scmp.le.s32.totalorder 2, %s16
      // Predicated region
      $region61: #{tpu_custom_call.1} parent=5 // pred_check
        %p2389 = pneg %p2388
      $region62: #{tpu_custom_call.1} parent=5 // pred_check_branch
        %2391 = sbr.rel (%p2389) target = $region64
      $region63: #{tpu_custom_call.1} parent=5 // pred_region
        %s2392 = ssub.s32 %s16, 2
        // Predicated region
        $region65: #{tpu_custom_call.1} parent=63 // pred_check
          %p2393 = pneg %p113
        $region66: #{tpu_custom_call.1} parent=63 // pred_check_branch
          %2395 = sbr.rel (%p2393) target = $region68
        $region67: #{tpu_custom_call.1} parent=63 // pred_region
          %s2396 = sand.u32 %s98, 1
          %s2397 = scalar_lea.sflag [#allocation5], %s2396
          %s2398 = sand.u32 %s98, 1
          %s2399 = smul.addr %s2398, 64
          %s2400 = scalar_lea.vmem [#allocation4], %s2399
          %2401 = dma.done %s2397, 1024
        $region68: #{tpu_custom_call.1} parent=63 // pred_fallthru
          _
      $region64: #{tpu_custom_call.1} parent=5 // pred_fallthru
        _
    $region6: #{tpu_custom_call.1} parent=1 // loop_footer
      %s20 = sadd.s32 1, %s16
    $region7: #{tpu_custom_call.1} parent=1 // loop_footer_branch
      %15 = sbr.rel target = $region3
    $region8: #{tpu_custom_call.1} parent=1 // loop_exit
      _
    %2402 = vsyncpa [#allocation5], 1
    %s2403 = scalar_lea.sflag [#allocation5], 1
    %2404 = vsyncpa %s2403, 1
    %2405 = vsyncpa [#allocation7], 1

</llo_original>
